<compile_context>
chip_gen: v5e
topology: v5e:2x2
jax: 0.10.0
libtpu: 0.0.40
codegen_flags: <defaults>
</compile_context>

<pallas_src>
import math
import functools

import jax
import jax.numpy as jnp
from jax.experimental import pallas as pl
from jax.experimental.pallas import tpu as pltpu


# ---------------------------------------------------------------------------
# Fused kernel: [embedding+projection+PE at step 0] + one encoder layer / step
# ---------------------------------------------------------------------------
def fused_kernel(B, S, A, num_heads,
                 x_ref, w_asset_ref, b_asset_ref, w_proj_ref, pe_ref,
                 wqkv_ref, wo_ref, w1_ref, w2_ref, vecs_ref,
                 y_ref, attn_ref,
                 h_ref):
    l = pl.program_id(0)
    rows, H = h_ref.shape
    D = H // num_heads

    # --- step-0 prologue: per-asset embeddings + projection + pos. encoding ---
    @pl.when(l == 0)
    def _embed():
        x = x_ref[...]                                  # [rows, A*20]
        acc = pe_ref[...]                               # PE + proj bias, [rows, H]
        for a in range(A):                              # tiny static loop over assets
            xa = x[:, a * 20:(a + 1) * 20]
            emb = jnp.dot(xa, w_asset_ref[...],
                          preferred_element_type=jnp.float32) + b_asset_ref[...]
            acc = acc + jnp.dot(emb, w_proj_ref[a],
                                preferred_element_type=jnp.float32)
        h_ref[...] = acc

    xl = h_ref[...]                                     # VMEM-resident activation

    vecs = vecs_ref[0]                                  # [8, 4H]: all per-layer vectors
    bqkv = vecs[0:1, :3 * H]
    b1 = vecs[1:2, :]
    bo, b2 = vecs[2:3, :H], vecs[3:4, :H]
    g1, be1 = vecs[4:5, :H], vecs[5:6, :H]
    g2, be2 = vecs[6:7, :H], vecs[7:8, :H]

    # --- fused Q/K/V projection (1/sqrt(D) already folded into the Q part) ---
    qkv = jnp.dot(xl, wqkv_ref[0], preferred_element_type=jnp.float32) + bqkv
    q, k, v = qkv[:, :H], qkv[:, H:2 * H], qkv[:, 2 * H:3 * H]

    def split_heads(t):                                 # [rows,H] -> [heads*B, S, D]
        t3 = t.reshape(B, S, H)
        return jnp.concatenate(
            [t3[:, :, h * D:(h + 1) * D] for h in range(num_heads)], axis=0)

    qh, kh, vh = split_heads(q), split_heads(k), split_heads(v)

    # --- attention: one batched contraction over all (head, batch) pairs ---
    scores = jnp.einsum('nqd,nkd->nqk', qh, kh,
                        preferred_element_type=jnp.float32)   # [heads*B, S, S]
    scores = scores - jnp.max(scores, axis=-1, keepdims=True)
    e = jnp.exp(scores)
    attn = e / jnp.sum(e, axis=-1, keepdims=True)
    attn_ref[0] = attn                                  # one store per layer

    ctx = jnp.einsum('nqk,nkd->nqd', attn, vh,
                     preferred_element_type=jnp.float32)      # [heads*B, S, D]
    ctx = jnp.concatenate(
        [ctx[h * B:(h + 1) * B] for h in range(num_heads)], axis=-1)  # [B,S,H]
    ctx = ctx.reshape(rows, H)

    attn_out = jnp.dot(ctx, wo_ref[0], preferred_element_type=jnp.float32) + bo

    def layernorm(z, g, b):
        mu = jnp.mean(z, axis=-1, keepdims=True)
        zc = z - mu
        var = jnp.mean(zc * zc, axis=-1, keepdims=True)
        return zc * jax.lax.rsqrt(var + 1e-5) * g + b

    x1 = layernorm(xl + attn_out, g1, be1)
    hidden = jnp.maximum(
        jnp.dot(x1, w1_ref[0], preferred_element_type=jnp.float32) + b1, 0.0)
    ff = jnp.dot(hidden, w2_ref[0], preferred_element_type=jnp.float32) + b2
    out = layernorm(x1 + ff, g2, be2)

    h_ref[...] = out                                    # carry to next layer

    @pl.when(l == pl.num_programs(0) - 1)
    def _finalize():
        y_ref[...] = out                                # single HBM writeback


# ---------------------------------------------------------------------------
# Parameters (mirror MarketTransformer.__init__: xavier weights, zero biases)
# ---------------------------------------------------------------------------
def xavier_uniform(key, fan_in, fan_out):
    bound = math.sqrt(6.0 / (fan_in + fan_out))
    w = jax.random.uniform(key, (fan_out, fan_in), jnp.float32, -bound, bound)
    return w.T                                          # stored [in, out]


def positional_encoding(max_len, d_model):
    pos = jnp.arange(max_len, dtype=jnp.float32)[:, None]
    div = jnp.exp(jnp.arange(0, d_model, 2, dtype=jnp.float32)
                  * (-math.log(10000.0) / d_model))
    pe = jnp.zeros((max_len, d_model), jnp.float32)
    pe = pe.at[:, 0::2].set(jnp.sin(pos * div))
    pe = pe.at[:, 1::2].set(jnp.cos(pos * div))
    return pe


def make_params(key, hidden_dim, num_heads, num_layers, num_assets):
    H = hidden_dim
    H4 = H // 4
    keys = iter(jax.random.split(key, 8 + 8 * num_layers))

    # shared per-asset embedding (price/tech/fund/market concat) as one [20,H] map
    w_asset = jnp.zeros((20, H), jnp.float32)
    w_asset = w_asset.at[0:5, 0:H4].set(xavier_uniform(next(keys), 5, H4))
    w_asset = w_asset.at[5:15, H4:2 * H4].set(xavier_uniform(next(keys), 10, H4))
    w_asset = w_asset.at[15:18, 2 * H4:3 * H4].set(xavier_uniform(next(keys), 3, H4))
    w_asset = w_asset.at[18:20, 3 * H4:4 * H4].set(xavier_uniform(next(keys), 2, H4))
    b_asset = jnp.zeros((H,), jnp.float32)

    w_proj = xavier_uniform(next(keys), num_assets * H, H)
    b_proj = jnp.zeros((H,), jnp.float32)

    layers = []
    for _ in range(num_layers):
        layers.append(dict(
            wq=xavier_uniform(next(keys), H, H), bq=jnp.zeros((H,), jnp.float32),
            wk=xavier_uniform(next(keys), H, H), bk=jnp.zeros((H,), jnp.float32),
            wv=xavier_uniform(next(keys), H, H), bv=jnp.zeros((H,), jnp.float32),
            wo=xavier_uniform(next(keys), H, H), bo=jnp.zeros((H,), jnp.float32),
            w1=xavier_uniform(next(keys), H, 4 * H), b1=jnp.zeros((4 * H,), jnp.float32),
            w2=xavier_uniform(next(keys), 4 * H, H), b2=jnp.zeros((H,), jnp.float32),
            g1=jnp.ones((H,), jnp.float32), be1=jnp.zeros((H,), jnp.float32),
            g2=jnp.ones((H,), jnp.float32), be2=jnp.zeros((H,), jnp.float32),
        ))
    return dict(w_asset=w_asset, b_asset=b_asset, w_proj=w_proj, b_proj=b_proj,
                layers=layers)


# ---------------------------------------------------------------------------
# Forward wrapper: pack params into layer-stacked arrays and run ONE kernel
# ---------------------------------------------------------------------------
def market_transformer_forward(x, params, num_heads, max_seq_len=60):
    B, S, A, _ = x.shape
    w_asset = params['w_asset']
    H = w_asset.shape[1]
    L = len(params['layers'])
    D = H // num_heads
    F4 = params['layers'][0]['w1'].shape[1]
    scale = 1.0 / math.sqrt(D)
    rows = B * S

    # host-side packing (cheap XLA ops outside the kernel)
    x2 = x[..., :20].astype(jnp.float32).reshape(rows, A * 20)
    pe = positional_encoding(max_seq_len, H)[:S]
    pe_bias = (jnp.broadcast_to(pe[None], (B, S, H)).reshape(rows, H)
               + params['b_proj'][None, :])
    w_proj3 = params['w_proj'].reshape(A, H, H)
    b_asset2 = params['b_asset'][None, :]

    def pad_row(v):
        return jnp.pad(v, (0, F4 - v.shape[0]))

    wqkv, wo, w1, w2, vecs = [], [], [], [], []
    for lp in params['layers']:
        wqkv.append(jnp.concatenate([lp['wq'] * scale, lp['wk'], lp['wv']], axis=1))
        wo.append(lp['wo']); w1.append(lp['w1']); w2.append(lp['w2'])
        vecs.append(jnp.stack([
            pad_row(jnp.concatenate([lp['bq'] * scale, lp['bk'], lp['bv']])),
            pad_row(lp['b1']),
            pad_row(lp['bo']), pad_row(lp['b2']),
            pad_row(lp['g1']), pad_row(lp['be1']),
            pad_row(lp['g2']), pad_row(lp['be2']),
        ]))
    wqkv = jnp.stack(wqkv); wo = jnp.stack(wo)
    w1 = jnp.stack(w1); w2 = jnp.stack(w2); vecs = jnp.stack(vecs)

    kernel = functools.partial(fused_kernel, B, S, A, num_heads)

    rep2 = lambda l: (0, 0)
    rep3 = lambda l: (0, 0, 0)
    lay3 = lambda l: (l, 0, 0)
    lay4 = lambda l: (l, 0, 0, 0)

    y, attn_all = pl.pallas_call(
        kernel,
        grid=(L,),
        in_specs=[
            pl.BlockSpec((rows, A * 20), rep2),           # raw features
            pl.BlockSpec((20, H), rep2),                  # shared asset embedding
            pl.BlockSpec((1, H), rep2),                   # asset embedding bias
            pl.BlockSpec((A, H, H), rep3),                # output projection (per asset)
            pl.BlockSpec((rows, H), rep2),                # PE + projection bias
            pl.BlockSpec((1, H, 3 * H), lay3),            # fused QKV weight   [L,...]
            pl.BlockSpec((1, H, H), lay3),                # attn out weight    [L,...]
            pl.BlockSpec((1, H, F4), lay3),               # FFN weight 1       [L,...]
            pl.BlockSpec((1, F4, H), lay3),               # FFN weight 2       [L,...]
            pl.BlockSpec((1, 8, F4), lay3),               # biases/LN vectors  [L,...]
        ],
        out_specs=(
            pl.BlockSpec((rows, H), rep2),                        # final activation
            pl.BlockSpec((1, num_heads * B, S, S), lay4),         # per-layer attention
        ),
        out_shape=(
            jax.ShapeDtypeStruct((rows, H), jnp.float32),
            jax.ShapeDtypeStruct((L, num_heads * B, S, S), jnp.float32),
        ),
        scratch_shapes=[pltpu.VMEM((rows, H), jnp.float32)],      # resident activation
        compiler_params=pltpu.CompilerParams(
            dimension_semantics=("arbitrary",),                   # layers are sequential
            vmem_limit_bytes=32 * 1024 * 1024),
    )(x2, w_asset, b_asset2, w_proj3, pe_bias, wqkv, wo, w1, w2, vecs)

    out = y.reshape(B, S, H)
    attns = [attn_all[l].reshape(num_heads, B, S, S).transpose(1, 0, 2, 3)
             for l in range(L)]
    return out, attns


# ---------------------------------------------------------------------------
# Pure-JAX reference (mirrors the PyTorch forward, eval mode)
# ---------------------------------------------------------------------------
def reference_forward(x, params, num_heads, max_seq_len=60):
    B, S, A, _ = x.shape
    H = params['w_asset'].shape[1]
    D = H // num_heads
    x20 = x[..., :20].astype(jnp.float32)
    embs = [x20[:, :, a, :] @ params['w_asset'] + params['b_asset'] for a in range(A)]
    h = jnp.concatenate(embs, axis=-1) @ params['w_proj'] + params['b_proj']
    h = h + positional_encoding(max_seq_len, H)[:S][None]

    def ln(z, g, b):
        mu = z.mean(-1, keepdims=True)
        var = ((z - mu) ** 2).mean(-1, keepdims=True)
        return (z - mu) / jnp.sqrt(var + 1e-5) * g + b

    attns = []
    for lp in params['layers']:
        q = (h @ lp['wq'] + lp['bq']).reshape(B, S, num_heads, D).transpose(0, 2, 1, 3)
        k = (h @ lp['wk'] + lp['bk']).reshape(B, S, num_heads, D).transpose(0, 2, 1, 3)
        v = (h @ lp['wv'] + lp['bv']).reshape(B, S, num_heads, D).transpose(0, 2, 1, 3)
        scores = jnp.einsum('bhqd,bhkd->bhqk', q, k) / math.sqrt(D)
        w = jax.nn.softmax(scores, axis=-1)
        attns.append(w)
        ctx = jnp.einsum('bhqk,bhkd->bhqd', w, v).transpose(0, 2, 1, 3).reshape(B, S, H)
        h = ln(h + ctx @ lp['wo'] + lp['bo'], lp['g1'], lp['be1'])
        ff = jnp.maximum(h @ lp['w1'] + lp['b1'], 0.0) @ lp['w2'] + lp['b2']
        h = ln(h + ff, lp['g2'], lp['be2'])
    return h, attns


# ---------------------------------------------------------------------------
if __name__ == "__main__":
    # small config: feature_dim=20, hidden=32, heads=4, layers=2, assets=2
    B, S, A, F = 2, 8, 2, 20
    H, NUM_HEADS, NUM_LAYERS = 32, 4, 2

    key = jax.random.PRNGKey(0)
    kx, kp = jax.random.split(key)
    x = jax.random.normal(kx, (B, S, A, F), jnp.float32)
    params = make_params(kp, H, NUM_HEADS, NUM_LAYERS, A)

    out, attns = market_transformer_forward(x, params, NUM_HEADS)
    out = jax.block_until_ready(out)
    attns = [jax.block_until_ready(a) for a in attns]

    assert out.shape == (B, S, H)
    assert all(a.shape == (B, NUM_HEADS, S, S) for a in attns)
    assert bool(jnp.all(jnp.isfinite(out)))
    for a in attns:
        assert bool(jnp.allclose(jnp.sum(a, axis=-1), 1.0, atol=1e-4))

    # sanity check against a pure-JAX reference (generous tolerance: MXU vs XLA
    # matmul precision may differ slightly; this catches logic errors, not ulps)
    ref_out, ref_attns = reference_forward(x, params, NUM_HEADS)
    assert float(jnp.max(jnp.abs(out - ref_out))) < 5e-2
    for a, ra in zip(attns, ref_attns):
        assert float(jnp.max(jnp.abs(a - ra))) < 5e-2

    print("KERNEL_OK")
</pallas_src>

<mosaic_0001>
module attributes {stable_mosaic.version = 11 : i64} {
  func.func @fused_kernel(%arg0: i32, %arg1: memref<16x40xf32, #tpu.memory_space<vmem>>, %arg2: memref<20x32xf32, #tpu.memory_space<vmem>>, %arg3: memref<1x32xf32, #tpu.memory_space<vmem>>, %arg4: memref<2x32x32xf32, #tpu.memory_space<vmem>>, %arg5: memref<16x32xf32, #tpu.memory_space<vmem>>, %arg6: memref<1x32x96xf32, #tpu.memory_space<vmem>>, %arg7: memref<1x32x32xf32, #tpu.memory_space<vmem>>, %arg8: memref<1x32x128xf32, #tpu.memory_space<vmem>>, %arg9: memref<1x128x32xf32, #tpu.memory_space<vmem>>, %arg10: memref<1x8x128xf32, #tpu.memory_space<vmem>>, %arg11: memref<16x32xf32, #tpu.memory_space<vmem>>, %arg12: memref<1x8x8x8xf32, #tpu.memory_space<vmem>>, %arg13: memref<16x32xf32, #tpu.memory_space<vmem>>) attributes {dimension_semantics = [#tpu.dimension_semantics<arbitrary>], iteration_bounds = array<i64: 2>, scalar_prefetch = 0 : i64, scratch_operands = 1 : i64, tpu.core_type = #tpu.core_type<tc>, window_params = [{pipeline_mode = #tpu.pipeline_mode<synchronous>, transform_indices = @transform_0, window_bounds = array<i64: 16, 40>}, {pipeline_mode = #tpu.pipeline_mode<synchronous>, transform_indices = @transform_1, window_bounds = array<i64: 20, 32>}, {pipeline_mode = #tpu.pipeline_mode<synchronous>, transform_indices = @transform_2, window_bounds = array<i64: 1, 32>}, {pipeline_mode = #tpu.pipeline_mode<synchronous>, transform_indices = @transform_3, window_bounds = array<i64: 2, 32, 32>}, {pipeline_mode = #tpu.pipeline_mode<synchronous>, transform_indices = @transform_4, window_bounds = array<i64: 16, 32>}, {transform_indices = @transform_5, window_bounds = array<i64: 1, 32, 96>}, {transform_indices = @transform_6, window_bounds = array<i64: 1, 32, 32>}, {transform_indices = @transform_7, window_bounds = array<i64: 1, 32, 128>}, {transform_indices = @transform_8, window_bounds = array<i64: 1, 128, 32>}, {transform_indices = @transform_9, window_bounds = array<i64: 1, 8, 128>}, {pipeline_mode = #tpu.pipeline_mode<synchronous>, transform_indices = @transform_10, window_bounds = array<i64: 16, 32>}, {transform_indices = @transform_11, window_bounds = array<i64: 1, 8, 8, 8>}]} {
    %c0_i32 = arith.constant 0 : i32
    %0 = arith.cmpi eq, %arg0, %c0_i32 : i32
    %1 = arith.extui %0 : i1 to i32
    %c0_i32_0 = arith.constant 0 : i32
    %2 = arith.cmpi ne, %1, %c0_i32_0 : i32
    scf.if %2 {
      %c0_42 = arith.constant 0 : index
      %c0_43 = arith.constant 0 : index
      %123 = vector.load %arg1[%c0_42, %c0_43] : memref<16x40xf32, #tpu.memory_space<vmem>>, vector<16x40xf32>
      %c0_44 = arith.constant 0 : index
      %c0_45 = arith.constant 0 : index
      %124 = vector.load %arg5[%c0_44, %c0_45] : memref<16x32xf32, #tpu.memory_space<vmem>>, vector<16x32xf32>
      %125 = vector.extract_strided_slice %123 {offsets = [0, 0], sizes = [16, 20], strides = [1, 1]} : vector<16x40xf32> to vector<16x20xf32>
      %c0_46 = arith.constant 0 : index
      %c0_47 = arith.constant 0 : index
      %126 = vector.load %arg2[%c0_46, %c0_47] : memref<20x32xf32, #tpu.memory_space<vmem>>, vector<20x32xf32>
      %cst_48 = arith.constant dense<0.000000e+00> : vector<16x32xf32>
      %127 = tpu.matmul %125, %126, %cst_48 {dimension_numbers = #tpu.dot_dimension_numbers<[1], [0], [0], [1], [0, 0, 1, 1], [], []>} : vector<16x20xf32>, vector<20x32xf32>, vector<16x32xf32> -> vector<16x32xf32>
      %c0_49 = arith.constant 0 : index
      %c0_50 = arith.constant 0 : index
      %128 = vector.load %arg3[%c0_49, %c0_50] : memref<1x32xf32, #tpu.memory_space<vmem>>, vector<1x32xf32>
      %129 = vector.broadcast %128 : vector<1x32xf32> to vector<16x32xf32>
      %130 = arith.addf %127, %129 : vector<16x32xf32>
      %c0_51 = arith.constant 0 : index
      %c0_52 = arith.constant 0 : index
      %c0_53 = arith.constant 0 : index
      %131 = vector.load %arg4[%c0_51, %c0_52, %c0_53] : memref<2x32x32xf32, #tpu.memory_space<vmem>>, vector<1x32x32xf32>
      %132 = vector.shape_cast %131 : vector<1x32x32xf32> to vector<32x32xf32>
      %cst_54 = arith.constant dense<0.000000e+00> : vector<16x32xf32>
      %133 = tpu.matmul %130, %132, %cst_54 {dimension_numbers = #tpu.dot_dimension_numbers<[1], [0], [0], [1], [0, 0, 1, 1], [], []>} : vector<16x32xf32>, vector<32x32xf32>, vector<16x32xf32> -> vector<16x32xf32>
      %134 = arith.addf %124, %133 : vector<16x32xf32>
      %135 = vector.extract_strided_slice %123 {offsets = [0, 20], sizes = [16, 20], strides = [1, 1]} : vector<16x40xf32> to vector<16x20xf32>
      %c0_55 = arith.constant 0 : index
      %c0_56 = arith.constant 0 : index
      %136 = vector.load %arg2[%c0_55, %c0_56] : memref<20x32xf32, #tpu.memory_space<vmem>>, vector<20x32xf32>
      %cst_57 = arith.constant dense<0.000000e+00> : vector<16x32xf32>
      %137 = tpu.matmul %135, %136, %cst_57 {dimension_numbers = #tpu.dot_dimension_numbers<[1], [0], [0], [1], [0, 0, 1, 1], [], []>} : vector<16x20xf32>, vector<20x32xf32>, vector<16x32xf32> -> vector<16x32xf32>
      %c0_58 = arith.constant 0 : index
      %c0_59 = arith.constant 0 : index
      %138 = vector.load %arg3[%c0_58, %c0_59] : memref<1x32xf32, #tpu.memory_space<vmem>>, vector<1x32xf32>
      %139 = vector.broadcast %138 : vector<1x32xf32> to vector<16x32xf32>
      %140 = arith.addf %137, %139 : vector<16x32xf32>
      %c1 = arith.constant 1 : index
      %c0_60 = arith.constant 0 : index
      %c0_61 = arith.constant 0 : index
      %141 = vector.load %arg4[%c1, %c0_60, %c0_61] : memref<2x32x32xf32, #tpu.memory_space<vmem>>, vector<1x32x32xf32>
      %142 = vector.shape_cast %141 : vector<1x32x32xf32> to vector<32x32xf32>
      %cst_62 = arith.constant dense<0.000000e+00> : vector<16x32xf32>
      %143 = tpu.matmul %140, %142, %cst_62 {dimension_numbers = #tpu.dot_dimension_numbers<[1], [0], [0], [1], [0, 0, 1, 1], [], []>} : vector<16x32xf32>, vector<32x32xf32>, vector<16x32xf32> -> vector<16x32xf32>
      %144 = arith.addf %134, %143 : vector<16x32xf32>
      %c0_63 = arith.constant 0 : index
      %c0_64 = arith.constant 0 : index
      %145 = vector.load %arg13[%c0_63, %c0_64] : memref<16x32xf32, #tpu.memory_space<vmem>>, vector<16x32xf32>
      tpu.vector_store %arg13[%c0_63, %c0_64], %144 {strides = array<i32>} : memref<16x32xf32, #tpu.memory_space<vmem>>, vector<16x32xf32>,
    } else {
    }
    %c0 = arith.constant 0 : index
    %c0_1 = arith.constant 0 : index
    %3 = vector.load %arg13[%c0, %c0_1] : memref<16x32xf32, #tpu.memory_space<vmem>>, vector<16x32xf32>
    %c0_2 = arith.constant 0 : index
    %c0_3 = arith.constant 0 : index
    %c0_4 = arith.constant 0 : index
    %4 = vector.load %arg10[%c0_2, %c0_3, %c0_4] : memref<1x8x128xf32, #tpu.memory_space<vmem>>, vector<1x8x128xf32>
    %5 = vector.shape_cast %4 : vector<1x8x128xf32> to vector<8x128xf32>
    %6 = vector.extract_strided_slice %5 {offsets = [0, 0], sizes = [1, 96], strides = [1, 1]} : vector<8x128xf32> to vector<1x96xf32>
    %7 = vector.extract_strided_slice %5 {offsets = [1, 0], sizes = [1, 128], strides = [1, 1]} : vector<8x128xf32> to vector<1x128xf32>
    %8 = vector.extract_strided_slice %5 {offsets = [2, 0], sizes = [1, 32], strides = [1, 1]} : vector<8x128xf32> to vector<1x32xf32>
    %9 = vector.extract_strided_slice %5 {offsets = [3, 0], sizes = [1, 32], strides = [1, 1]} : vector<8x128xf32> to vector<1x32xf32>
    %10 = vector.extract_strided_slice %5 {offsets = [4, 0], sizes = [1, 32], strides = [1, 1]} : vector<8x128xf32> to vector<1x32xf32>
    %11 = vector.extract_strided_slice %5 {offsets = [5, 0], sizes = [1, 32], strides = [1, 1]} : vector<8x128xf32> to vector<1x32xf32>
    %12 = vector.extract_strided_slice %5 {offsets = [6, 0], sizes = [1, 32], strides = [1, 1]} : vector<8x128xf32> to vector<1x32xf32>
    %13 = vector.extract_strided_slice %5 {offsets = [7, 0], sizes = [1, 32], strides = [1, 1]} : vector<8x128xf32> to vector<1x32xf32>
    %c0_5 = arith.constant 0 : index
    %c0_6 = arith.constant 0 : index
    %c0_7 = arith.constant 0 : index
    %14 = vector.load %arg6[%c0_5, %c0_6, %c0_7] : memref<1x32x96xf32, #tpu.memory_space<vmem>>, vector<1x32x96xf32>
    %15 = vector.shape_cast %14 : vector<1x32x96xf32> to vector<32x96xf32>
    %cst = arith.constant dense<0.000000e+00> : vector<16x96xf32>
    %16 = tpu.matmul %3, %15, %cst {dimension_numbers = #tpu.dot_dimension_numbers<[1], [0], [0], [1], [0, 0, 1, 1], [], []>} : vector<16x32xf32>, vector<32x96xf32>, vector<16x96xf32> -> vector<16x96xf32>
    %17 = vector.broadcast %6 : vector<1x96xf32> to vector<16x96xf32>
    %18 = arith.addf %16, %17 : vector<16x96xf32>
    %19 = vector.extract_strided_slice %18 {offsets = [0, 0], sizes = [16, 32], strides = [1, 1]} : vector<16x96xf32> to vector<16x32xf32>
    %20 = vector.extract_strided_slice %18 {offsets = [0, 32], sizes = [16, 32], strides = [1, 1]} : vector<16x96xf32> to vector<16x32xf32>
    %21 = vector.extract_strided_slice %18 {offsets = [0, 64], sizes = [16, 32], strides = [1, 1]} : vector<16x96xf32> to vector<16x32xf32>
    %22 = vector.shape_cast %19 : vector<16x32xf32> to vector<2x8x32xf32>
    %23 = vector.extract_strided_slice %22 {offsets = [0, 0, 0], sizes = [2, 8, 8], strides = [1, 1, 1]} : vector<2x8x32xf32> to vector<2x8x8xf32>
    %24 = vector.extract_strided_slice %22 {offsets = [0, 0, 8], sizes = [2, 8, 8], strides = [1, 1, 1]} : vector<2x8x32xf32> to vector<2x8x8xf32>
    %25 = vector.extract_strided_slice %22 {offsets = [0, 0, 16], sizes = [2, 8, 8], strides = [1, 1, 1]} : vector<2x8x32xf32> to vector<2x8x8xf32>
    %26 = vector.extract_strided_slice %22 {offsets = [0, 0, 24], sizes = [2, 8, 8], strides = [1, 1, 1]} : vector<2x8x32xf32> to vector<2x8x8xf32>
    %27 = tpu.concatenate %23, %24, %25, %26 in 0 : vector<2x8x8xf32>, vector<2x8x8xf32>, vector<2x8x8xf32>, vector<2x8x8xf32> -> vector<8x8x8xf32>
    %28 = vector.shape_cast %20 : vector<16x32xf32> to vector<2x8x32xf32>
    %29 = vector.extract_strided_slice %28 {offsets = [0, 0, 0], sizes = [2, 8, 8], strides = [1, 1, 1]} : vector<2x8x32xf32> to vector<2x8x8xf32>
    %30 = vector.extract_strided_slice %28 {offsets = [0, 0, 8], sizes = [2, 8, 8], strides = [1, 1, 1]} : vector<2x8x32xf32> to vector<2x8x8xf32>
    %31 = vector.extract_strided_slice %28 {offsets = [0, 0, 16], sizes = [2, 8, 8], strides = [1, 1, 1]} : vector<2x8x32xf32> to vector<2x8x8xf32>
    %32 = vector.extract_strided_slice %28 {offsets = [0, 0, 24], sizes = [2, 8, 8], strides = [1, 1, 1]} : vector<2x8x32xf32> to vector<2x8x8xf32>
    %33 = tpu.concatenate %29, %30, %31, %32 in 0 : vector<2x8x8xf32>, vector<2x8x8xf32>, vector<2x8x8xf32>, vector<2x8x8xf32> -> vector<8x8x8xf32>
    %34 = vector.shape_cast %21 : vector<16x32xf32> to vector<2x8x32xf32>
    %35 = vector.extract_strided_slice %34 {offsets = [0, 0, 0], sizes = [2, 8, 8], strides = [1, 1, 1]} : vector<2x8x32xf32> to vector<2x8x8xf32>
    %36 = vector.extract_strided_slice %34 {offsets = [0, 0, 8], sizes = [2, 8, 8], strides = [1, 1, 1]} : vector<2x8x32xf32> to vector<2x8x8xf32>
    %37 = vector.extract_strided_slice %34 {offsets = [0, 0, 16], sizes = [2, 8, 8], strides = [1, 1, 1]} : vector<2x8x32xf32> to vector<2x8x8xf32>
    %38 = vector.extract_strided_slice %34 {offsets = [0, 0, 24], sizes = [2, 8, 8], strides = [1, 1, 1]} : vector<2x8x32xf32> to vector<2x8x8xf32>
    %39 = tpu.concatenate %35, %36, %37, %38 in 0 : vector<2x8x8xf32>, vector<2x8x8xf32>, vector<2x8x8xf32>, vector<2x8x8xf32> -> vector<8x8x8xf32>
    "tpu.trace_start"() <{level = 10 : i32, message = "nqd,nkd->nqk"}> : () -> ()
    %cst_8 = arith.constant dense<0.000000e+00> : vector<8x8x8xf32>
    %40 = tpu.matmul %27, %33, %cst_8 {dimension_numbers = #tpu.dot_dimension_numbers<[2], [2], [1], [1], [0, 0, 0, 1, 1, 1], [0], [0]>} : vector<8x8x8xf32>, vector<8x8x8xf32>, vector<8x8x8xf32> -> vector<8x8x8xf32>
    "tpu.trace_stop"() : () -> ()
    %cst_9 = arith.constant dense<0xFF800000> : vector<8x8xf32>
    %41 = vector.multi_reduction <maximumf>, %40, %cst_9 [2] : vector<8x8x8xf32> to vector<8x8xf32>
    %42 = vector.shape_cast %41 : vector<8x8xf32> to vector<8x8x1xf32>
    %43 = vector.broadcast %42 : vector<8x8x1xf32> to vector<8x8x8xf32>
    %44 = arith.subf %40, %43 : vector<8x8x8xf32>
    %45 = math.exp %44 : vector<8x8x8xf32>
    %cst_10 = arith.constant dense<0.000000e+00> : vector<8x8xf32>
    %46 = vector.multi_reduction <add>, %45, %cst_10 [2] : vector<8x8x8xf32> to vector<8x8xf32>
    %47 = vector.shape_cast %46 : vector<8x8xf32> to vector<8x8x1xf32>
    %48 = vector.broadcast %47 : vector<8x8x1xf32> to vector<8x8x8xf32>
    %49 = arith.divf %45, %48 : vector<8x8x8xf32>
    %c0_11 = arith.constant 0 : index
    %c0_12 = arith.constant 0 : index
    %c0_13 = arith.constant 0 : index
    %c0_14 = arith.constant 0 : index
    %50 = vector.load %arg12[%c0_11, %c0_12, %c0_13, %c0_14] : memref<1x8x8x8xf32, #tpu.memory_space<vmem>>, vector<1x8x8x8xf32>
    %51 = vector.shape_cast %50 : vector<1x8x8x8xf32> to vector<8x8x8xf32>
    %52 = vector.shape_cast %49 : vector<8x8x8xf32> to vector<1x8x8x8xf32>
    tpu.vector_store %arg12[%c0_11, %c0_12, %c0_13, %c0_14], %52 {strides = array<i32>} : memref<1x8x8x8xf32, #tpu.memory_space<vmem>>, vector<1x8x8x8xf32>,
    "tpu.trace_start"() <{level = 10 : i32, message = "nqk,nkd->nqd"}> : () -> ()
    %cst_15 = arith.constant dense<0.000000e+00> : vector<8x8x8xf32>
    %53 = tpu.matmul %49, %39, %cst_15 {dimension_numbers = #tpu.dot_dimension_numbers<[2], [1], [1], [2], [0, 0, 0, 1, 1, 2], [0], [0]>} : vector<8x8x8xf32>, vector<8x8x8xf32>, vector<8x8x8xf32> -> vector<8x8x8xf32>
    "tpu.trace_stop"() : () -> ()
    %54 = vector.extract_strided_slice %53 {offsets = [0, 0, 0], sizes = [2, 8, 8], strides = [1, 1, 1]} : vector<8x8x8xf32> to vector<2x8x8xf32>
    %55 = vector.extract_strided_slice %53 {offsets = [2, 0, 0], sizes = [2, 8, 8], strides = [1, 1, 1]} : vector<8x8x8xf32> to vector<2x8x8xf32>
    %56 = vector.extract_strided_slice %53 {offsets = [4, 0, 0], sizes = [2, 8, 8], strides = [1, 1, 1]} : vector<8x8x8xf32> to vector<2x8x8xf32>
    %57 = vector.extract_strided_slice %53 {offsets = [6, 0, 0], sizes = [2, 8, 8], strides = [1, 1, 1]} : vector<8x8x8xf32> to vector<2x8x8xf32>
    %58 = tpu.concatenate %54, %55, %56, %57 in 2 : vector<2x8x8xf32>, vector<2x8x8xf32>, vector<2x8x8xf32>, vector<2x8x8xf32> -> vector<2x8x32xf32>
    %59 = vector.shape_cast %58 : vector<2x8x32xf32> to vector<16x32xf32>
    %c0_16 = arith.constant 0 : index
    %c0_17 = arith.constant 0 : index
    %c0_18 = arith.constant 0 : index
    %60 = vector.load %arg7[%c0_16, %c0_17, %c0_18] : memref<1x32x32xf32, #tpu.memory_space<vmem>>, vector<1x32x32xf32>
    %61 = vector.shape_cast %60 : vector<1x32x32xf32> to vector<32x32xf32>
    %cst_19 = arith.constant dense<0.000000e+00> : vector<16x32xf32>
    %62 = tpu.matmul %59, %61, %cst_19 {dimension_numbers = #tpu.dot_dimension_numbers<[1], [0], [0], [1], [0, 0, 1, 1], [], []>} : vector<16x32xf32>, vector<32x32xf32>, vector<16x32xf32> -> vector<16x32xf32>
    %63 = vector.broadcast %8 : vector<1x32xf32> to vector<16x32xf32>
    %64 = arith.addf %62, %63 : vector<16x32xf32>
    %65 = arith.addf %3, %64 : vector<16x32xf32>
    %cst_20 = arith.constant dense<0.000000e+00> : vector<16xf32>
    %66 = vector.multi_reduction <add>, %65, %cst_20 [1] : vector<16x32xf32> to vector<16xf32>
    %67 = vector.shape_cast %66 : vector<16xf32> to vector<16x1xf32>
    %cst_21 = arith.constant 3.200000e+01 : f32
    %68 = vector.broadcast %cst_21 : f32 to vector<16x1xf32>
    %69 = arith.divf %67, %68 : vector<16x1xf32>
    %70 = vector.broadcast %69 : vector<16x1xf32> to vector<16x32xf32>
    %71 = arith.subf %65, %70 : vector<16x32xf32>
    %72 = arith.mulf %71, %71 : vector<16x32xf32>
    %cst_22 = arith.constant dense<0.000000e+00> : vector<16xf32>
    %73 = vector.multi_reduction <add>, %72, %cst_22 [1] : vector<16x32xf32> to vector<16xf32>
    %74 = vector.shape_cast %73 : vector<16xf32> to vector<16x1xf32>
    %cst_23 = arith.constant 3.200000e+01 : f32
    %75 = vector.broadcast %cst_23 : f32 to vector<16x1xf32>
    %76 = arith.divf %74, %75 : vector<16x1xf32>
    %cst_24 = arith.constant 9.99999974E-6 : f32
    %77 = vector.broadcast %cst_24 : f32 to vector<16x1xf32>
    %78 = arith.addf %76, %77 : vector<16x1xf32>
    %79 = math.rsqrt %78 : vector<16x1xf32>
    %80 = vector.broadcast %79 : vector<16x1xf32> to vector<16x32xf32>
    %81 = arith.mulf %71, %80 : vector<16x32xf32>
    %82 = vector.broadcast %10 : vector<1x32xf32> to vector<16x32xf32>
    %83 = arith.mulf %81, %82 : vector<16x32xf32>
    %84 = vector.broadcast %11 : vector<1x32xf32> to vector<16x32xf32>
    %85 = arith.addf %83, %84 : vector<16x32xf32>
    %c0_25 = arith.constant 0 : index
    %c0_26 = arith.constant 0 : index
    %c0_27 = arith.constant 0 : index
    %86 = vector.load %arg8[%c0_25, %c0_26, %c0_27] : memref<1x32x128xf32, #tpu.memory_space<vmem>>, vector<1x32x128xf32>
    %87 = vector.shape_cast %86 : vector<1x32x128xf32> to vector<32x128xf32>
    %cst_28 = arith.constant dense<0.000000e+00> : vector<16x128xf32>
    %88 = tpu.matmul %85, %87, %cst_28 {dimension_numbers = #tpu.dot_dimension_numbers<[1], [0], [0], [1], [0, 0, 1, 1], [], []>} : vector<16x32xf32>, vector<32x128xf32>, vector<16x128xf32> -> vector<16x128xf32>
    %89 = vector.broadcast %7 : vector<1x128xf32> to vector<16x128xf32>
    %90 = arith.addf %88, %89 : vector<16x128xf32>
    %cst_29 = arith.constant 0.000000e+00 : f32
    %91 = vector.broadcast %cst_29 : f32 to vector<16x128xf32>
    %92 = arith.maximumf %90, %91 : vector<16x128xf32>
    %c0_30 = arith.constant 0 : index
    %c0_31 = arith.constant 0 : index
    %c0_32 = arith.constant 0 : index
    %93 = vector.load %arg9[%c0_30, %c0_31, %c0_32] : memref<1x128x32xf32, #tpu.memory_space<vmem>>, vector<1x128x32xf32>
    %94 = vector.shape_cast %93 : vector<1x128x32xf32> to vector<128x32xf32>
    %cst_33 = arith.constant dense<0.000000e+00> : vector<16x32xf32>
    %95 = tpu.matmul %92, %94, %cst_33 {dimension_numbers = #tpu.dot_dimension_numbers<[1], [0], [0], [1], [0, 0, 1, 1], [], []>} : vector<16x128xf32>, vector<128x32xf32>, vector<16x32xf32> -> vector<16x32xf32>
    %96 = vector.broadcast %9 : vector<1x32xf32> to vector<16x32xf32>
    %97 = arith.addf %95, %96 : vector<16x32xf32>
    %98 = arith.addf %85, %97 : vector<16x32xf32>
    %cst_34 = arith.constant dense<0.000000e+00> : vector<16xf32>
    %99 = vector.multi_reduction <add>, %98, %cst_34 [1] : vector<16x32xf32> to vector<16xf32>
    %100 = vector.shape_cast %99 : vector<16xf32> to vector<16x1xf32>
    %cst_35 = arith.constant 3.200000e+01 : f32
    %101 = vector.broadcast %cst_35 : f32 to vector<16x1xf32>
    %102 = arith.divf %100, %101 : vector<16x1xf32>
    %103 = vector.broadcast %102 : vector<16x1xf32> to vector<16x32xf32>
    %104 = arith.subf %98, %103 : vector<16x32xf32>
    %105 = arith.mulf %104, %104 : vector<16x32xf32>
    %cst_36 = arith.constant dense<0.000000e+00> : vector<16xf32>
    %106 = vector.multi_reduction <add>, %105, %cst_36 [1] : vector<16x32xf32> to vector<16xf32>
    %107 = vector.shape_cast %106 : vector<16xf32> to vector<16x1xf32>
    %cst_37 = arith.constant 3.200000e+01 : f32
    %108 = vector.broadcast %cst_37 : f32 to vector<16x1xf32>
    %109 = arith.divf %107, %108 : vector<16x1xf32>
    %cst_38 = arith.constant 9.99999974E-6 : f32
    %110 = vector.broadcast %cst_38 : f32 to vector<16x1xf32>
    %111 = arith.addf %109, %110 : vector<16x1xf32>
    %112 = math.rsqrt %111 : vector<16x1xf32>
    %113 = vector.broadcast %112 : vector<16x1xf32> to vector<16x32xf32>
    %114 = arith.mulf %104, %113 : vector<16x32xf32>
    %115 = vector.broadcast %12 : vector<1x32xf32> to vector<16x32xf32>
    %116 = arith.mulf %114, %115 : vector<16x32xf32>
    %117 = vector.broadcast %13 : vector<1x32xf32> to vector<16x32xf32>
    %118 = arith.addf %116, %117 : vector<16x32xf32>
    %c0_39 = arith.constant 0 : index
    %c0_40 = arith.constant 0 : index
    %119 = vector.load %arg13[%c0_39, %c0_40] : memref<16x32xf32, #tpu.memory_space<vmem>>, vector<16x32xf32>
    tpu.vector_store %arg13[%c0_39, %c0_40], %118 {strides = array<i32>} : memref<16x32xf32, #tpu.memory_space<vmem>>, vector<16x32xf32>,
    %c1_i32 = arith.constant 1 : i32
    %120 = arith.cmpi eq, %arg0, %c1_i32 : i32
    %121 = arith.extui %120 : i1 to i32
    %c0_i32_41 = arith.constant 0 : i32
    %122 = arith.cmpi ne, %121, %c0_i32_41 : i32
    scf.if %122 {
      %c0_42 = arith.constant 0 : index
      %c0_43 = arith.constant 0 : index
      %123 = vector.load %arg11[%c0_42, %c0_43] : memref<16x32xf32, #tpu.memory_space<vmem>>, vector<16x32xf32>
      tpu.vector_store %arg11[%c0_42, %c0_43], %118 {strides = array<i32>} : memref<16x32xf32, #tpu.memory_space<vmem>>, vector<16x32xf32>,
    } else {
    }
    return
  }
  func.func @transform_0(%arg0: i32) -> (i32, i32) {
    %c0_i32 = arith.constant 0 : i32
    %c0_i32_0 = arith.constant 0 : i32
    %c0_i32_1 = arith.constant 0 : i32
    return %c0_i32, %c0_i32_0 : i32, i32
  }
  func.func @transform_1(%arg0: i32) -> (i32, i32) {
    %c0_i32 = arith.constant 0 : i32
    %c0_i32_0 = arith.constant 0 : i32
    %c0_i32_1 = arith.constant 0 : i32
    return %c0_i32, %c0_i32_0 : i32, i32
  }
  func.func @transform_2(%arg0: i32) -> (i32, i32) {
    %c0_i32 = arith.constant 0 : i32
    %c0_i32_0 = arith.constant 0 : i32
    %c0_i32_1 = arith.constant 0 : i32
    return %c0_i32, %c0_i32_0 : i32, i32
  }
  func.func @transform_3(%arg0: i32) -> (i32, i32, i32) {
    %c0_i32 = arith.constant 0 : i32
    %c0_i32_0 = arith.constant 0 : i32
    %c0_i32_1 = arith.constant 0 : i32
    %c0_i32_2 = arith.constant 0 : i32
    return %c0_i32, %c0_i32_0, %c0_i32_1 : i32, i32, i32
  }
  func.func @transform_4(%arg0: i32) -> (i32, i32) {
    %c0_i32 = arith.constant 0 : i32
    %c0_i32_0 = arith.constant 0 : i32
    %c0_i32_1 = arith.constant 0 : i32
    return %c0_i32, %c0_i32_0 : i32, i32
  }
  func.func @transform_5(%arg0: i32) -> (i32, i32, i32) {
    %c0_i32 = arith.constant 0 : i32
    %c0_i32_0 = arith.constant 0 : i32
    %c0_i32_1 = arith.constant 0 : i32
    return %arg0, %c0_i32, %c0_i32_0 : i32, i32, i32
  }
  func.func @transform_6(%arg0: i32) -> (i32, i32, i32) {
    %c0_i32 = arith.constant 0 : i32
    %c0_i32_0 = arith.constant 0 : i32
    %c0_i32_1 = arith.constant 0 : i32
    return %arg0, %c0_i32, %c0_i32_0 : i32, i32, i32
  }
  func.func @transform_7(%arg0: i32) -> (i32, i32, i32) {
    %c0_i32 = arith.constant 0 : i32
    %c0_i32_0 = arith.constant 0 : i32
    %c0_i32_1 = arith.constant 0 : i32
    return %arg0, %c0_i32, %c0_i32_0 : i32, i32, i32
  }
  func.func @transform_8(%arg0: i32) -> (i32, i32, i32) {
    %c0_i32 = arith.constant 0 : i32
    %c0_i32_0 = arith.constant 0 : i32
    %c0_i32_1 = arith.constant 0 : i32
    return %arg0, %c0_i32, %c0_i32_0 : i32, i32, i32
  }
  func.func @transform_9(%arg0: i32) -> (i32, i32, i32) {
    %c0_i32 = arith.constant 0 : i32
    %c0_i32_0 = arith.constant 0 : i32
    %c0_i32_1 = arith.constant 0 : i32
    return %arg0, %c0_i32, %c0_i32_0 : i32, i32, i32
  }
  func.func @transform_10(%arg0: i32) -> (i32, i32) {
    %c0_i32 = arith.constant 0 : i32
    %c0_i32_0 = arith.constant 0 : i32
    %c0_i32_1 = arith.constant 0 : i32
    return %c0_i32, %c0_i32_0 : i32, i32
  }
  func.func @transform_11(%arg0: i32) -> (i32, i32, i32, i32) {
    %c0_i32 = arith.constant 0 : i32
    %c0_i32_0 = arith.constant 0 : i32
    %c0_i32_1 = arith.constant 0 : i32
    %c0_i32_2 = arith.constant 0 : i32
    return %arg0, %c0_i32, %c0_i32_0, %c0_i32_1 : i32, i32, i32, i32
  }
}

</mosaic_0001>

<llo_original>
// kernel: tpu_custom_call.1
$region0: #{tpu_custom_call.1}
  #allocation0 [shape = 'u32[]', space=smem, size = 0x4, offset = 0x4, fixed_abs, tag = 'smem constant byte address 0x4 - core index']
  #allocation1 [shape = 'u32[72,128]{1,0:T(1,128)}', space=vmem, size = 0x9000, scoped, tag = 'internal scratch']
  #allocation2 [shape = 'f32[16,32]{1,0:T(8,128)}', space=vmem, size = 0x2000, scoped, tag = 'scratch operand']
  %s0 = inlined_call_operand.vmem [shape: f32[16,40], index: 0, kind: input, shape index: {}]
  %s1 = inlined_call_operand.vmem [shape: f32[20,32], index: 1, kind: input, shape index: {}]
  %s2 = inlined_call_operand.vmem [shape: f32[1,32], index: 2, kind: input, shape index: {}]
  %s3 = inlined_call_operand.vmem [shape: f32[2,32,32], index: 3, kind: input, shape index: {}]
  %s4 = inlined_call_operand.vmem [shape: f32[16,32], index: 4, kind: input, shape index: {}]
  %s5 = inlined_call_operand.vmem [shape: f32[2,32,96], index: 5, kind: input, shape index: {}]
  %s6 = inlined_call_operand.vmem [shape: f32[2,32,32], index: 6, kind: input, shape index: {}]
  %s7 = inlined_call_operand.vmem [shape: f32[2,32,128], index: 7, kind: input, shape index: {}]
  %s8 = inlined_call_operand.vmem [shape: f32[2,128,32], index: 8, kind: input, shape index: {}]
  %s9 = inlined_call_operand.hbm [shape: f32[2,8,128], index: 9, kind: input, shape index: {}]
  %s10 = inlined_call_operand.hbm [shape: f32[16,32], index: 10, kind: output, shape index: {0}]
  %s11 = inlined_call_operand.hbm [shape: f32[2,8,8,8], index: 11, kind: output, shape index: {1}]
  %12 = xla_tuple %s10, %s11
  %s13 = sld [smem:[#allocation0]]
  $region93: #{tpu_custom_call.1} parent=0
    _
  %s15 = ssub.s32 1, %s13
  %s16 = scalar_select 0, %s15, %s13
  $region1: #{tpu_custom_call.1} parent=0
    #allocation3 [shape = 'u8[8192]{0}', space=vmem, size = 0x2000, scoped, tag = 'input window, operand 9']
    #allocation4 [shape = 's32[2]{0}', space=sflag, size = 0x8, scoped, tag = 'scoped memory for tpu_custom_call.1']
    #allocation5 [shape = 's32[2]{0}', space=sflag, size = 0x8, scoped, tag = 'scoped memory for tpu_custom_call.1']
    #allocation6 [shape = 'u8[8192]{0}', space=vmem, size = 0x2000, scoped, tag = 'output window, operand 0, single buffered']
    #allocation7 [shape = 'u8[65536]{0}', space=vmem, size = 0x10000, scoped, tag = 'output window, operand 1']
    #allocation8 [shape = 's32[2]{0}', space=sflag, size = 0x8, scoped, tag = 'scoped memory for tpu_custom_call.1']
    %17 = vsyncpa [#allocation4], 0
    %s18 = scalar_lea.sflag [#allocation4], 1
    %19 = vsyncpa %s18, 0
    %20 = vsyncpa [#allocation5], 0
    %21 = vsyncpa [#allocation8], 0
    %s22 = scalar_lea.sflag [#allocation8], 1
    %23 = vsyncpa %s22, 0
    loop: start=0, step=1, limit=4
    $region2: #{tpu_custom_call.1} parent=1 // loop_pre_header
      _
    $region3: #{tpu_custom_call.1} parent=1 // loop_header
      %s25 = sphi 0, %s29
      %p26 = scmp.ge.s32.totalorder %s25, 4
      %s33 = sphi 0, %s33
      %s35 = sphi 0, %s33
      %s36 = sphi 0, %s35
      %s50 = sphi 0, %s36
      %s54 = sphi 0, %s54
      %s56 = sphi 0, %s54
      %s57 = sphi 0, %s56
      %s71 = sphi 0, %s57
      %s75 = sphi 0, %s75
      %s77 = sphi 0, %s75
      %s78 = sphi 0, %s77
      %s92 = sphi 0, %s78
      %s96 = sphi 0, %s96
      %s98 = sphi 0, %s96
      %s99 = sphi 0, %s98
      %s113 = sphi 0, %s99
      %s117 = sphi 0, %s117
      %s119 = sphi 0, %s117
      %s120 = sphi 0, %s119
      %s134 = sphi 0, %s120
      %s140 = sphi 0, %s142
      %s143 = sphi 0, %s140
      %s144 = sphi 0, %s143
      %s160 = sphi 0, %s144
      %s166 = sphi 0, %s168
      %s169 = sphi 0, %s166
      %s170 = sphi 0, %s169
      %s186 = sphi 0, %s170
      %s192 = sphi 0, %s194
      %s195 = sphi 0, %s192
      %s196 = sphi 0, %s195
      %s212 = sphi 0, %s196
      %s218 = sphi 0, %s220
      %s221 = sphi 0, %s218
      %s222 = sphi 0, %s221
      %s238 = sphi 0, %s222
      %s244 = sphi 0, %s246
      %s247 = sphi 0, %s244
      %s248 = sphi 0, %s247
      %s264 = sphi 0, %s248
      %s268 = sphi 0, %s268
      %s270 = sphi 0, %s268
      %s271 = sphi 0, %s270
      %s285 = sphi 0, %s271
      %s291 = sphi 0, %s293
      %s294 = sphi 0, %s291
      %s295 = sphi 0, %s294
      %s311 = sphi 0, %s295
    $region4: #{tpu_custom_call.1} parent=1 // loop_header_branch
      %28 = sbr.rel (%p26) target = $region8
    $region5: #{tpu_custom_call.1} parent=1 // loop_body
      %s30 = ssub.s32 %s25, 1
      %s31 = ssub.s32 %s25, 2
      %s32 = sadd.s32 %s25, 1
      %s34 = sadd.s32 %s33, 1
      %p37 = scmp.eq.s32.totalorder %s25, 1
      %p38 = scmp.ne.s32.totalorder %s33, %s35
      %p39 = scmp.eq.s32.totalorder %s25, 0
      %p40 = por %p38, %p39
      %p41 = scmp.ne.s32.totalorder %s33, %s35
      %p42 = scmp.eq.s32.totalorder %s30, 1
      %p43 = por %p41, %p42
      %p44 = scmp.ne.s32.totalorder %s35, %s36
      %p45 = scmp.eq.s32.totalorder %s30, 0
      %p46 = por %p44, %p45
      %p47 = scmp.ne.s32.totalorder %s35, %s36
      %p48 = scmp.eq.s32.totalorder %s31, 1
      %p49 = por %p47, %p48
      %p51 = scmp.ne.s32.totalorder %s36, %s50
      %p52 = scmp.eq.s32.totalorder %s31, 0
      %p53 = por %p51, %p52
      %s55 = sadd.s32 %s54, 1
      %p58 = scmp.eq.s32.totalorder %s25, 1
      %p59 = scmp.ne.s32.totalorder %s54, %s56
      %p60 = scmp.eq.s32.totalorder %s25, 0
      %p61 = por %p59, %p60
      %p62 = scmp.ne.s32.totalorder %s54, %s56
      %p63 = scmp.eq.s32.totalorder %s30, 1
      %p64 = por %p62, %p63
      %p65 = scmp.ne.s32.totalorder %s56, %s57
      %p66 = scmp.eq.s32.totalorder %s30, 0
      %p67 = por %p65, %p66
      %p68 = scmp.ne.s32.totalorder %s56, %s57
      %p69 = scmp.eq.s32.totalorder %s31, 1
      %p70 = por %p68, %p69
      %p72 = scmp.ne.s32.totalorder %s57, %s71
      %p73 = scmp.eq.s32.totalorder %s31, 0
      %p74 = por %p72, %p73
      %s76 = sadd.s32 %s75, 1
      %p79 = scmp.eq.s32.totalorder %s25, 1
      %p80 = scmp.ne.s32.totalorder %s75, %s77
      %p81 = scmp.eq.s32.totalorder %s25, 0
      %p82 = por %p80, %p81
      %p83 = scmp.ne.s32.totalorder %s75, %s77
      %p84 = scmp.eq.s32.totalorder %s30, 1
      %p85 = por %p83, %p84
      %p86 = scmp.ne.s32.totalorder %s77, %s78
      %p87 = scmp.eq.s32.totalorder %s30, 0
      %p88 = por %p86, %p87
      %p89 = scmp.ne.s32.totalorder %s77, %s78
      %p90 = scmp.eq.s32.totalorder %s31, 1
      %p91 = por %p89, %p90
      %p93 = scmp.ne.s32.totalorder %s78, %s92
      %p94 = scmp.eq.s32.totalorder %s31, 0
      %p95 = por %p93, %p94
      %s97 = sadd.s32 %s96, 1
      %p100 = scmp.eq.s32.totalorder %s25, 1
      %p101 = scmp.ne.s32.totalorder %s96, %s98
      %p102 = scmp.eq.s32.totalorder %s25, 0
      %p103 = por %p101, %p102
      %p104 = scmp.ne.s32.totalorder %s96, %s98
      %p105 = scmp.eq.s32.totalorder %s30, 1
      %p106 = por %p104, %p105
      %p107 = scmp.ne.s32.totalorder %s98, %s99
      %p108 = scmp.eq.s32.totalorder %s30, 0
      %p109 = por %p107, %p108
      %p110 = scmp.ne.s32.totalorder %s98, %s99
      %p111 = scmp.eq.s32.totalorder %s31, 1
      %p112 = por %p110, %p111
      %p114 = scmp.ne.s32.totalorder %s99, %s113
      %p115 = scmp.eq.s32.totalorder %s31, 0
      %p116 = por %p114, %p115
      %s118 = sadd.s32 %s117, 1
      %p121 = scmp.eq.s32.totalorder %s25, 1
      %p122 = scmp.ne.s32.totalorder %s117, %s119
      %p123 = scmp.eq.s32.totalorder %s25, 0
      %p124 = por %p122, %p123
      %p125 = scmp.ne.s32.totalorder %s117, %s119
      %p126 = scmp.eq.s32.totalorder %s30, 1
      %p127 = por %p125, %p126
      %p128 = scmp.ne.s32.totalorder %s119, %s120
      %p129 = scmp.eq.s32.totalorder %s30, 0
      %p130 = por %p128, %p129
      %p131 = scmp.ne.s32.totalorder %s119, %s120
      %p132 = scmp.eq.s32.totalorder %s31, 1
      %p133 = por %p131, %p132
      %p135 = scmp.ne.s32.totalorder %s120, %s134
      %p136 = scmp.eq.s32.totalorder %s31, 0
      %p137 = por %p135, %p136
      %s138 = ssub.s32 %s25, %s32
      %p139 = scmp.eq.s32.totalorder %s138, 0
      %s141 = sadd.s32 %s140, 1
      %s142 = scalar_select %p139, %s140, %s141
      %p145 = pneg %p139
      %p146 = scmp.eq.s32.totalorder %s25, 1
      %p147 = por %p145, %p146
      %p148 = scmp.ne.s32.totalorder %s140, %s143
      %p149 = scmp.eq.s32.totalorder %s25, 0
      %p150 = por %p148, %p149
      %p151 = scmp.ne.s32.totalorder %s140, %s143
      %p152 = scmp.eq.s32.totalorder %s30, 1
      %p153 = por %p151, %p152
      %p154 = scmp.ne.s32.totalorder %s143, %s144
      %p155 = scmp.eq.s32.totalorder %s30, 0
      %p156 = por %p154, %p155
      %p157 = scmp.ne.s32.totalorder %s143, %s144
      %p158 = scmp.eq.s32.totalorder %s31, 1
      %p159 = por %p157, %p158
      %p161 = scmp.ne.s32.totalorder %s144, %s160
      %p162 = scmp.eq.s32.totalorder %s31, 0
      %p163 = por %p161, %p162
      %s164 = ssub.s32 %s25, %s32
      %p165 = scmp.eq.s32.totalorder %s164, 0
      %s167 = sadd.s32 %s166, 1
      %s168 = scalar_select %p165, %s166, %s167
      %p171 = pneg %p165
      %p172 = scmp.eq.s32.totalorder %s25, 1
      %p173 = por %p171, %p172
      %p174 = scmp.ne.s32.totalorder %s166, %s169
      %p175 = scmp.eq.s32.totalorder %s25, 0
      %p176 = por %p174, %p175
      %p177 = scmp.ne.s32.totalorder %s166, %s169
      %p178 = scmp.eq.s32.totalorder %s30, 1
      %p179 = por %p177, %p178
      %p180 = scmp.ne.s32.totalorder %s169, %s170
      %p181 = scmp.eq.s32.totalorder %s30, 0
      %p182 = por %p180, %p181
      %p183 = scmp.ne.s32.totalorder %s169, %s170
      %p184 = scmp.eq.s32.totalorder %s31, 1
      %p185 = por %p183, %p184
      %p187 = scmp.ne.s32.totalorder %s170, %s186
      %p188 = scmp.eq.s32.totalorder %s31, 0
      %p189 = por %p187, %p188
      %s190 = ssub.s32 %s25, %s32
      %p191 = scmp.eq.s32.totalorder %s190, 0
      %s193 = sadd.s32 %s192, 1
      %s194 = scalar_select %p191, %s192, %s193
      %p197 = pneg %p191
      %p198 = scmp.eq.s32.totalorder %s25, 1
      %p199 = por %p197, %p198
      %p200 = scmp.ne.s32.totalorder %s192, %s195
      %p201 = scmp.eq.s32.totalorder %s25, 0
      %p202 = por %p200, %p201
      %p203 = scmp.ne.s32.totalorder %s192, %s195
      %p204 = scmp.eq.s32.totalorder %s30, 1
      %p205 = por %p203, %p204
      %p206 = scmp.ne.s32.totalorder %s195, %s196
      %p207 = scmp.eq.s32.totalorder %s30, 0
      %p208 = por %p206, %p207
      %p209 = scmp.ne.s32.totalorder %s195, %s196
      %p210 = scmp.eq.s32.totalorder %s31, 1
      %p211 = por %p209, %p210
      %p213 = scmp.ne.s32.totalorder %s196, %s212
      %p214 = scmp.eq.s32.totalorder %s31, 0
      %p215 = por %p213, %p214
      %s216 = ssub.s32 %s25, %s32
      %p217 = scmp.eq.s32.totalorder %s216, 0
      %s219 = sadd.s32 %s218, 1
      %s220 = scalar_select %p217, %s218, %s219
      %p223 = pneg %p217
      %p224 = scmp.eq.s32.totalorder %s25, 1
      %p225 = por %p223, %p224
      %p226 = scmp.ne.s32.totalorder %s218, %s221
      %p227 = scmp.eq.s32.totalorder %s25, 0
      %p228 = por %p226, %p227
      %p229 = scmp.ne.s32.totalorder %s218, %s221
      %p230 = scmp.eq.s32.totalorder %s30, 1
      %p231 = por %p229, %p230
      %p232 = scmp.ne.s32.totalorder %s221, %s222
      %p233 = scmp.eq.s32.totalorder %s30, 0
      %p234 = por %p232, %p233
      %p235 = scmp.ne.s32.totalorder %s221, %s222
      %p236 = scmp.eq.s32.totalorder %s31, 1
      %p237 = por %p235, %p236
      %p239 = scmp.ne.s32.totalorder %s222, %s238
      %p240 = scmp.eq.s32.totalorder %s31, 0
      %p241 = por %p239, %p240
      %s242 = ssub.s32 %s25, %s32
      %p243 = scmp.eq.s32.totalorder %s242, 0
      %s245 = sadd.s32 %s244, 1
      %s246 = scalar_select %p243, %s244, %s245
      %p249 = pneg %p243
      %p250 = scmp.eq.s32.totalorder %s25, 1
      %p251 = por %p249, %p250
      %p252 = scmp.ne.s32.totalorder %s244, %s247
      %p253 = scmp.eq.s32.totalorder %s25, 0
      %p254 = por %p252, %p253
      %p255 = scmp.ne.s32.totalorder %s244, %s247
      %p256 = scmp.eq.s32.totalorder %s30, 1
      %p257 = por %p255, %p256
      %p258 = scmp.ne.s32.totalorder %s247, %s248
      %p259 = scmp.eq.s32.totalorder %s30, 0
      %p260 = por %p258, %p259
      %p261 = scmp.ne.s32.totalorder %s247, %s248
      %p262 = scmp.eq.s32.totalorder %s31, 1
      %p263 = por %p261, %p262
      %p265 = scmp.ne.s32.totalorder %s248, %s264
      %p266 = scmp.eq.s32.totalorder %s31, 0
      %p267 = por %p265, %p266
      %s269 = sadd.s32 %s268, 1
      %p272 = scmp.eq.s32.totalorder %s25, 1
      %p273 = scmp.ne.s32.totalorder %s268, %s270
      %p274 = scmp.eq.s32.totalorder %s25, 0
      %p275 = por %p273, %p274
      %p276 = scmp.ne.s32.totalorder %s268, %s270
      %p277 = scmp.eq.s32.totalorder %s30, 1
      %p278 = por %p276, %p277
      %p279 = scmp.ne.s32.totalorder %s270, %s271
      %p280 = scmp.eq.s32.totalorder %s30, 0
      %p281 = por %p279, %p280
      %p282 = scmp.ne.s32.totalorder %s270, %s271
      %p283 = scmp.eq.s32.totalorder %s31, 1
      %p284 = por %p282, %p283
      %p286 = scmp.ne.s32.totalorder %s271, %s285
      %p287 = scmp.eq.s32.totalorder %s31, 0
      %p288 = por %p286, %p287
      %s289 = ssub.s32 %s25, %s32
      %p290 = scmp.eq.s32.totalorder %s289, 0
      %s292 = sadd.s32 %s291, 1
      %s293 = scalar_select %p290, %s291, %s292
      %p296 = pneg %p290
      %p297 = scmp.eq.s32.totalorder %s25, 1
      %p298 = por %p296, %p297
      %p299 = scmp.ne.s32.totalorder %s291, %s294
      %p300 = scmp.eq.s32.totalorder %s25, 0
      %p301 = por %p299, %p300
      %p302 = scmp.ne.s32.totalorder %s291, %s294
      %p303 = scmp.eq.s32.totalorder %s30, 1
      %p304 = por %p302, %p303
      %p305 = scmp.ne.s32.totalorder %s294, %s295
      %p306 = scmp.eq.s32.totalorder %s30, 0
      %p307 = por %p305, %p306
      %p308 = scmp.ne.s32.totalorder %s294, %s295
      %p309 = scmp.eq.s32.totalorder %s31, 1
      %p310 = por %p308, %p309
      %p312 = scmp.ne.s32.totalorder %s295, %s311
      %p313 = scmp.eq.s32.totalorder %s31, 0
      %p314 = por %p312, %p313
      %p315 = scmp.le.s32.totalorder 1, %s25
      %p316 = scmp.lt.s32.totalorder %s25, 3
      %p317 = pnand %p315, %p316
      %p318 = pneg %p317
      // Predicated region
      $region9: #{tpu_custom_call.1} parent=5 // pred_check
        _
      $region10: #{tpu_custom_call.1} parent=5 // pred_check_branch
        %320 = sbr.rel (%p317) target = $region12
      $region11: #{tpu_custom_call.1} parent=5 // pred_region
        %s321 = ssub.s32 %s25, 1
        // Predicated region
        $region13: #{tpu_custom_call.1} parent=11 // pred_check
          %p322 = pneg %p46
        $region14: #{tpu_custom_call.1} parent=11 // pred_check_branch
          %324 = sbr.rel (%p322) target = $region16
        $region15: #{tpu_custom_call.1} parent=11 // pred_region
          _
        $region16: #{tpu_custom_call.1} parent=11 // pred_fallthru
          _
        // Predicated region
        $region17: #{tpu_custom_call.1} parent=11 // pred_check
          %p325 = pneg %p67
        $region18: #{tpu_custom_call.1} parent=11 // pred_check_branch
          %327 = sbr.rel (%p325) target = $region20
        $region19: #{tpu_custom_call.1} parent=11 // pred_region
          _
        $region20: #{tpu_custom_call.1} parent=11 // pred_fallthru
          _
        // Predicated region
        $region21: #{tpu_custom_call.1} parent=11 // pred_check
          %p328 = pneg %p88
        $region22: #{tpu_custom_call.1} parent=11 // pred_check_branch
          %330 = sbr.rel (%p328) target = $region24
        $region23: #{tpu_custom_call.1} parent=11 // pred_region
          _
        $region24: #{tpu_custom_call.1} parent=11 // pred_fallthru
          _
        // Predicated region
        $region25: #{tpu_custom_call.1} parent=11 // pred_check
          %p331 = pneg %p109
        $region26: #{tpu_custom_call.1} parent=11 // pred_check_branch
          %333 = sbr.rel (%p331) target = $region28
        $region27: #{tpu_custom_call.1} parent=11 // pred_region
          _
        $region28: #{tpu_custom_call.1} parent=11 // pred_fallthru
          _
        // Predicated region
        $region29: #{tpu_custom_call.1} parent=11 // pred_check
          %p334 = pneg %p130
        $region30: #{tpu_custom_call.1} parent=11 // pred_check_branch
          %336 = sbr.rel (%p334) target = $region32
        $region31: #{tpu_custom_call.1} parent=11 // pred_region
          _
        $region32: #{tpu_custom_call.1} parent=11 // pred_fallthru
          _
      $region12: #{tpu_custom_call.1} parent=5 // pred_fallthru
        _
      %p337 = scmp.lt.s32.totalorder %s25, 2
      // Predicated region
      $region33: #{tpu_custom_call.1} parent=5 // pred_check
        %p338 = pneg %p337
      $region34: #{tpu_custom_call.1} parent=5 // pred_check_branch
        %340 = sbr.rel (%p338) target = $region36
      $region35: #{tpu_custom_call.1} parent=5 // pred_region
        // Predicated region
        $region37: #{tpu_custom_call.1} parent=35 // pred_check
          %p341 = pneg %p150
        $region38: #{tpu_custom_call.1} parent=35 // pred_check_branch
          %343 = sbr.rel (%p341) target = $region40
        $region39: #{tpu_custom_call.1} parent=35 // pred_region
          %p344 = scmp.lt.s32.totalorder %s25, 1
          %s345 = scalar_select %p344, %s25, 1
          %s346 = smul.addr %s345, 4
          %s347 = smul.addr %s346, 8
          %s348 = scalar_lea.vmem %s5, %s347
        $region40: #{tpu_custom_call.1} parent=35 // pred_fallthru
          _
        // Predicated region
        $region41: #{tpu_custom_call.1} parent=35 // pred_check
          %p349 = pneg %p176
        $region42: #{tpu_custom_call.1} parent=35 // pred_check_branch
          %351 = sbr.rel (%p349) target = $region44
        $region43: #{tpu_custom_call.1} parent=35 // pred_region
          %p352 = scmp.lt.s32.totalorder %s25, 1
          %s353 = scalar_select %p352, %s25, 1
          %s354 = smul.addr %s353, 4
          %s355 = smul.addr %s354, 8
          %s356 = scalar_lea.vmem %s6, %s355
        $region44: #{tpu_custom_call.1} parent=35 // pred_fallthru
          _
        // Predicated region
        $region45: #{tpu_custom_call.1} parent=35 // pred_check
          %p357 = pneg %p202
        $region46: #{tpu_custom_call.1} parent=35 // pred_check_branch
          %359 = sbr.rel (%p357) target = $region48
        $region47: #{tpu_custom_call.1} parent=35 // pred_region
          %p360 = scmp.lt.s32.totalorder %s25, 1
          %s361 = scalar_select %p360, %s25, 1
          %s362 = smul.addr %s361, 4
          %s363 = smul.addr %s362, 8
          %s364 = scalar_lea.vmem %s7, %s363
        $region48: #{tpu_custom_call.1} parent=35 // pred_fallthru
          _
        // Predicated region
        $region49: #{tpu_custom_call.1} parent=35 // pred_check
          %p365 = pneg %p228
        $region50: #{tpu_custom_call.1} parent=35 // pred_check_branch
          %367 = sbr.rel (%p365) target = $region52
        $region51: #{tpu_custom_call.1} parent=35 // pred_region
          %p368 = scmp.lt.s32.totalorder %s25, 1
          %s369 = scalar_select %p368, %s25, 1
          %s370 = smul.addr %s369, 16
          %s371 = smul.addr %s370, 8
          %s372 = scalar_lea.vmem %s8, %s371
        $region52: #{tpu_custom_call.1} parent=35 // pred_fallthru
          _
        // Predicated region
        $region53: #{tpu_custom_call.1} parent=35 // pred_check
          %p373 = pneg %p254
        $region54: #{tpu_custom_call.1} parent=35 // pred_check_branch
          %375 = sbr.rel (%p373) target = $region56
        $region55: #{tpu_custom_call.1} parent=35 // pred_region
          %s376 = sand.u32 %s244, 1
          %s377 = scalar_lea.sflag [#allocation4], %s376
          %s378 = sand.u32 %s244, 1
          %s379 = smul.addr %s378, 8
          %s380 = scalar_lea.vmem [#allocation3], %s379
          %382 = vsyncadd %s377, 0
          %s383 = smul.addr %s25, 8
          %s384 = scalar_lea.hbm %s9, %s383
          %s386 = sshll.u32 %s384, 4
          %s387 = int_to_ptr.hbm [resolvable:$true] %s386
          %s388 = sshll.u32 %s380, 4
          %s389 = int_to_ptr.vmem [resolvable:$true] %s388
          %391 = dma.hbm_to_vmem [thread:$0]  %s387, 128, %s389, %s377
        $region56: #{tpu_custom_call.1} parent=35 // pred_fallthru
          _
      $region36: #{tpu_custom_call.1} parent=5 // pred_fallthru
        _
      %p392 = scmp.le.s32.totalorder 1, %s25
      %p393 = scmp.lt.s32.totalorder %s25, 3
      %p394 = pnand %p392, %p393
      %p395 = pneg %p394
      // Predicated region
      $region57: #{tpu_custom_call.1} parent=5 // pred_check
        _
      $region58: #{tpu_custom_call.1} parent=5 // pred_check_branch
        %397 = sbr.rel (%p394) target = $region60
      $region59: #{tpu_custom_call.1} parent=5 // pred_region
        %s398 = ssub.s32 %s25, 1
        %s399 = sand.u32 %s247, 1
        %s400 = scalar_lea.sflag [#allocation4], %s399
        %s401 = sand.u32 %s247, 1
        %s402 = smul.addr %s401, 8
        %s403 = scalar_lea.vmem [#allocation3], %s402
        // Predicated region
        $region61: #{tpu_custom_call.1} parent=59 // pred_check
          %p404 = pneg %p260
        $region62: #{tpu_custom_call.1} parent=59 // pred_check_branch
          %406 = sbr.rel (%p404) target = $region64
        $region63: #{tpu_custom_call.1} parent=59 // pred_region
          %408 = dma.done %s400, 128
        $region64: #{tpu_custom_call.1} parent=59 // pred_fallthru
          _
        %p409 = pneg %p46
        %p410 = pneg %p43
        %p411 = pneg %p67
        %p412 = pneg %p64
        %p413 = pneg %p88
        %p414 = pneg %p85
        %p415 = pneg %p109
        %p416 = pneg %p106
        %p417 = pneg %p130
        %p418 = pneg %p127
        %p419 = scmp.lt.s32.totalorder %s30, 1
        %s420 = scalar_select %p419, %s30, 1
        %s421 = smul.addr %s420, 4
        %s422 = smul.addr %s421, 8
        %s423 = scalar_lea.vmem %s5, %s422
        %p424 = pneg %p156
        %p425 = pneg %p153
        %p426 = scmp.lt.s32.totalorder %s30, 1
        %s427 = scalar_select %p426, %s30, 1
        %s428 = smul.addr %s427, 4
        %s429 = smul.addr %s428, 8
        %s430 = scalar_lea.vmem %s6, %s429
        %p431 = pneg %p182
        %p432 = pneg %p179
        %p433 = scmp.lt.s32.totalorder %s30, 1
        %s434 = scalar_select %p433, %s30, 1
        %s435 = smul.addr %s434, 4
        %s436 = smul.addr %s435, 8
        %s437 = scalar_lea.vmem %s7, %s436
        %p438 = pneg %p208
        %p439 = pneg %p205
        %p440 = scmp.lt.s32.totalorder %s30, 1
        %s441 = scalar_select %p440, %s30, 1
        %s442 = smul.addr %s441, 16
        %s443 = smul.addr %s442, 8
        %s444 = scalar_lea.vmem %s8, %s443
        %p445 = pneg %p234
        %p446 = pneg %p231
        %s447 = sand.u32 %s247, 1
        %s448 = scalar_lea.sflag [#allocation4], %s447
        %s449 = sand.u32 %s247, 1
        %s450 = smul.addr %s449, 8
        %s451 = scalar_lea.vmem [#allocation3], %s450
        %p452 = pneg %p260
        %p453 = pneg %p257
        %p454 = pneg %p281
        %p455 = pneg %p278
        %p456 = pneg %p307
        %p457 = pneg %p304
        %s458 = sand.u32 %s294, 1
        %s459 = scalar_lea.sflag [#allocation8], %s458
        %s460 = sand.u32 %s294, 1
        %s461 = smul.addr %s460, 64
        %s462 = scalar_lea.vmem [#allocation7], %s461
        %p463 = scmp.lt.s32.totalorder %s30, 1
        %s464 = scalar_select %p463, %s30, 1
        %s465 = smul.addr %s464, 4
        %s466 = smul.addr %s465, 8
        %s467 = scalar_lea.vmem %s5, %s466
        %p468 = scmp.lt.s32.totalorder %s30, 1
        %s469 = scalar_select %p468, %s30, 1
        %s470 = smul.addr %s469, 4
        %s471 = smul.addr %s470, 8
        %s472 = scalar_lea.vmem %s6, %s471
        %p473 = scmp.lt.s32.totalorder %s30, 1
        %s474 = scalar_select %p473, %s30, 1
        %s475 = smul.addr %s474, 4
        %s476 = smul.addr %s475, 8
        %s477 = scalar_lea.vmem %s7, %s476
        %p478 = scmp.lt.s32.totalorder %s30, 1
        %s479 = scalar_select %p478, %s30, 1
        %s480 = smul.addr %s479, 16
        %s481 = smul.addr %s480, 8
        %s482 = scalar_lea.vmem %s8, %s481
        %p483 = scmp.eq.s32.totalorder %s30, 0
        // Predicated region
        $region65: #{tpu_custom_call.1} parent=59 // pred_check
          %p484 = pneg %p483
        $region66: #{tpu_custom_call.1} parent=59 // pred_check_branch
          %486 = sbr.rel (%p484) target = $region68
        $region67: #{tpu_custom_call.1} parent=59 // pred_region
          %v487 = vld [vmem:[%s0] sm:$0xff]
          %v488 = vld [vmem:[%s0 + $0x8] sm:$0xff]
          %v489 = vld [vmem:[%s4] sm:$0xff]
          %v490 = vld [vmem:[%s4 + $0x8] sm:$0xff]
          %v491 = vld [vmem:[%s1] sm:$0xff]
          %v492 = vld [vmem:[%s1 + $0x8] sm:$0xff]
          %v493 = vld [vmem:[%s1 + $0x10] sm:$0xf]
          %v494 = vld [vmem:[%s2] sm:$0x1]
          %v496 = vperm.slane %v494, 0
          %vm498 = vcmask 162816
          %v500 = vsel %vm498, %v487, 0
          %v503 = vsel %vm498, %v488, 0
          %vm505 = vcmask 1043456
          %v507 = vsel %vm505, %v493, 0
          %509 = vmatpush.msra.mxu0 0.0
          %510 = vmatpush.msra.mxu0 0.0
          %511 = vmatpush.msra.mxu0 0.0
          %512 = vmatpush.msra.mxu0 0.0
          %513 = vmatpush.msra.mxu0 0.0
          %514 = vmatpush.msra.mxu0 0.0
          %515 = vmatpush.msra.mxu0 0.0
          %516 = vmatpush.msra.mxu0 0.0
          %517 = vmatpush.msra.mxu0 0.0
          %518 = vmatpush.msra.mxu0 0.0
          %519 = vmatpush.msra.mxu0 0.0
          %520 = vmatpush.msra.mxu0 0.0
          %521 = vmatpush.msra.mxu0 0.0
          %522 = vmatpush.msra.mxu0 %v507
          %523 = vmatpush.msra.mxu0 %v492
          %524 = vmatpush.msra.mxu0 %v491
          %525 = vmatmul.f32.gmra.mxu0 %v500
          %v526 = vpop.f32.mrf.mxu0
          %v527 = vadd.f32 %v496, %v526
          %528 = vmatmul.f32.gmra.mxu0 %v503
          %v529 = vpop.f32.mrf.mxu0
          %v530 = vadd.f32 %v496, %v529
          %531 = vdwg.mxu0
          %v532 = vld [vmem:[%s3] sm:$0xff]
          %v533 = vld [vmem:[%s3 + $0x8] sm:$0xff]
          %v534 = vld [vmem:[%s3 + $0x10] sm:$0xff]
          %v535 = vld [vmem:[%s3 + $0x18] sm:$0xff]
          %vm536 = vcmask 261120
          %v538 = vsel %vm536, %v527, 0
          %v541 = vsel %vm536, %v530, 0
          %543 = vmatpush.msra.mxu0 0.0
          %544 = vmatpush.msra.mxu0 0.0
          %545 = vmatpush.msra.mxu0 0.0
          %546 = vmatpush.msra.mxu0 0.0
          %547 = vmatpush.msra.mxu0 0.0
          %548 = vmatpush.msra.mxu0 0.0
          %549 = vmatpush.msra.mxu0 0.0
          %550 = vmatpush.msra.mxu0 0.0
          %551 = vmatpush.msra.mxu0 0.0
          %552 = vmatpush.msra.mxu0 0.0
          %553 = vmatpush.msra.mxu0 0.0
          %554 = vmatpush.msra.mxu0 0.0
          %555 = vmatpush.msra.mxu0 %v535
          %556 = vmatpush.msra.mxu0 %v534
          %557 = vmatpush.msra.mxu0 %v533
          %558 = vmatpush.msra.mxu0 %v532
          %559 = vmatmul.f32.gmra.mxu0 %v538
          %v560 = vpop.f32.mrf.mxu0
          %v561 = vadd.f32 0.0, %v560
          %562 = vmatmul.f32.gmra.mxu0 %v541
          %v563 = vpop.f32.mrf.mxu0
          %v564 = vadd.f32 0.0, %v563
          %565 = vdwg.mxu0
          %v566 = vadd.f32 %v489, %v561
          %v567 = vadd.f32 %v490, %v564
          %568 = vrot.lane.b32.xlu0 %v487, 108
          %v569 = vpop.permute.xlu0 %568
          %570 = vrot.lane.b32.xlu0 %v488, 108
          %v571 = vpop.permute.xlu0 %570
          %v572 = vsel %vm498, %v569, 0
          %v574 = vsel %vm498, %v571, 0
          %576 = vmatpush.msra.mxu0 0.0
          %577 = vmatpush.msra.mxu0 0.0
          %578 = vmatpush.msra.mxu0 0.0
          %579 = vmatpush.msra.mxu0 0.0
          %580 = vmatpush.msra.mxu0 0.0
          %581 = vmatpush.msra.mxu0 0.0
          %582 = vmatpush.msra.mxu0 0.0
          %583 = vmatpush.msra.mxu0 0.0
          %584 = vmatpush.msra.mxu0 0.0
          %585 = vmatpush.msra.mxu0 0.0
          %586 = vmatpush.msra.mxu0 0.0
          %587 = vmatpush.msra.mxu0 0.0
          %588 = vmatpush.msra.mxu0 0.0
          %589 = vmatpush.msra.mxu0 %v507
          %590 = vmatpush.msra.mxu0 %v492
          %591 = vmatpush.msra.mxu0 %v491
          %592 = vmatmul.f32.gmra.mxu0 %v572
          %v593 = vpop.f32.mrf.mxu0
          %v594 = vadd.f32 %v496, %v593
          %595 = vmatmul.f32.gmra.mxu0 %v574
          %v596 = vpop.f32.mrf.mxu0
          %v597 = vadd.f32 %v496, %v596
          %598 = vdwg.mxu0
          %s599 = scalar_lea.vmem %s3, 32
          %v600 = vld [vmem:[%s599] sm:$0xff]
          %v601 = vld [vmem:[%s599 + $0x8] sm:$0xff]
          %v602 = vld [vmem:[%s599 + $0x10] sm:$0xff]
          %v603 = vld [vmem:[%s599 + $0x18] sm:$0xff]
          %v605 = vsel %vm536, %v594, 0
          %v608 = vsel %vm536, %v597, 0
          %610 = vmatpush.msra.mxu0 0.0
          %611 = vmatpush.msra.mxu0 0.0
          %612 = vmatpush.msra.mxu0 0.0
          %613 = vmatpush.msra.mxu0 0.0
          %614 = vmatpush.msra.mxu0 0.0
          %615 = vmatpush.msra.mxu0 0.0
          %616 = vmatpush.msra.mxu0 0.0
          %617 = vmatpush.msra.mxu0 0.0
          %618 = vmatpush.msra.mxu0 0.0
          %619 = vmatpush.msra.mxu0 0.0
          %620 = vmatpush.msra.mxu0 0.0
          %621 = vmatpush.msra.mxu0 0.0
          %622 = vmatpush.msra.mxu0 %v603
          %623 = vmatpush.msra.mxu0 %v602
          %624 = vmatpush.msra.mxu0 %v601
          %625 = vmatpush.msra.mxu0 %v600
          %626 = vmatmul.f32.gmra.mxu0 %v605
          %v627 = vpop.f32.mrf.mxu0
          %v628 = vadd.f32 0.0, %v627
          %629 = vmatmul.f32.gmra.mxu0 %v608
          %v630 = vpop.f32.mrf.mxu0
          %v631 = vadd.f32 0.0, %v630
          %632 = vdwg.mxu0
          %v633 = vadd.f32 %v566, %v628
          %v634 = vadd.f32 %v567, %v631
          %635 = vst.msk [vmem:[#allocation2] sm:$0xff] %vm536, %v633
          %636 = vst.msk [vmem:[#allocation2 + $0x8] sm:$0xff] %vm536, %v634
        $region68: #{tpu_custom_call.1} parent=59 // pred_fallthru
          _
        %v637 = vld [vmem:[#allocation2] sm:$0xff]
        %v638 = vld [vmem:[#allocation2 + $0x8] sm:$0xff]
        %v639 = vld [vmem:[%s403] sm:$0xff]
        %v640 = vld [vmem:[%s467] sm:$0xff]
        %v641 = vld [vmem:[%s467 + $0x8] sm:$0xff]
        %v642 = vld [vmem:[%s467 + $0x10] sm:$0xff]
        %v643 = vld [vmem:[%s467 + $0x18] sm:$0xff]
        %v644 = vperm.slane %v639, 0
        %vm645 = vcmask 261120
        %v647 = vsel %vm645, %v637, 0
        %v650 = vsel %vm645, %v638, 0
        %652 = vmatpush.msra.mxu0 0.0
        %653 = vmatpush.msra.mxu0 0.0
        %654 = vmatpush.msra.mxu0 0.0
        %655 = vmatpush.msra.mxu0 0.0
        %656 = vmatpush.msra.mxu0 0.0
        %657 = vmatpush.msra.mxu0 0.0
        %658 = vmatpush.msra.mxu0 0.0
        %659 = vmatpush.msra.mxu0 0.0
        %660 = vmatpush.msra.mxu0 0.0
        %661 = vmatpush.msra.mxu0 0.0
        %662 = vmatpush.msra.mxu0 0.0
        %663 = vmatpush.msra.mxu0 0.0
        %664 = vmatpush.msra.mxu0 %v643
        %665 = vmatpush.msra.mxu0 %v642
        %666 = vmatpush.msra.mxu0 %v641
        %667 = vmatpush.msra.mxu0 %v640
        %668 = vmatmul.f32.gmra.mxu0 %v647
        %v669 = vpop.f32.mrf.mxu0
        %v670 = vadd.f32 %v644, %v669
        %671 = vmatmul.f32.gmra.mxu0 %v650
        %v672 = vpop.f32.mrf.mxu0
        %v673 = vadd.f32 %v644, %v672
        %674 = vdwg.mxu0
        %677 = vrot.lane.b32.xlu0 %v670, 120
        %v678 = vpop.permute.xlu0 %677
        %679 = vrot.lane.b32.xlu0 %v673, 120
        %v680 = vpop.permute.xlu0 %679
        %681 = vrot.lane.b32.xlu0 %v670, 112
        %v682 = vpop.permute.xlu0 %681
        %683 = vrot.lane.b32.xlu0 %v673, 112
        %v684 = vpop.permute.xlu0 %683
        %685 = vrot.lane.b32.xlu0 %v670, 104
        %v686 = vpop.permute.xlu0 %685
        %687 = vrot.lane.b32.xlu0 %v673, 104
        %v688 = vpop.permute.xlu0 %687
        %689 = vrot.lane.b32.xlu0 %v670, 96
        %v690 = vpop.permute.xlu0 %689
        %vm691 = vcmask 64512
        %v692 = vsel %vm691, %v670, 0
        %v694 = vsel %vm691, %v690, 0
        %696 = vmatpush.xpose.msra.mxu0 0.0
        %697 = vmatpush.xpose.msra.mxu0 0.0
        %698 = vmatpush.xpose.msra.mxu0 0.0
        %699 = vmatpush.xpose.msra.mxu0 0.0
        %700 = vmatpush.xpose.msra.mxu0 0.0
        %701 = vmatpush.xpose.msra.mxu0 0.0
        %702 = vmatpush.xpose.msra.mxu0 0.0
        %703 = vmatpush.xpose.msra.mxu0 0.0
        %704 = vmatpush.xpose.msra.mxu0 0.0
        %705 = vmatpush.xpose.msra.mxu0 0.0
        %706 = vmatpush.xpose.msra.mxu0 0.0
        %707 = vmatpush.xpose.msra.mxu0 0.0
        %708 = vmatpush.xpose.msra.mxu0 0.0
        %709 = vmatpush.xpose.msra.mxu0 0.0
        %710 = vmatpush.xpose.msra.mxu0 0.0
        %711 = vmatpush.xpose.msra.mxu0 %v694
        %712 = vmatmul.f32.gmra.mxu0 %v692
        %v713 = vpop.f32.mrf.mxu0
        %v714 = vadd.f32 0.0, %v713
        %715 = vdwg.mxu0
        %716 = vrot.lane.b32.xlu0 %v673, 96
        %v717 = vpop.permute.xlu0 %716
        %v718 = vsel %vm691, %v673, 0
        %v720 = vsel %vm691, %v717, 0
        %722 = vmatpush.xpose.msra.mxu0 0.0
        %723 = vmatpush.xpose.msra.mxu0 0.0
        %724 = vmatpush.xpose.msra.mxu0 0.0
        %725 = vmatpush.xpose.msra.mxu0 0.0
        %726 = vmatpush.xpose.msra.mxu0 0.0
        %727 = vmatpush.xpose.msra.mxu0 0.0
        %728 = vmatpush.xpose.msra.mxu0 0.0
        %729 = vmatpush.xpose.msra.mxu0 0.0
        %730 = vmatpush.xpose.msra.mxu0 0.0
        %731 = vmatpush.xpose.msra.mxu0 0.0
        %732 = vmatpush.xpose.msra.mxu0 0.0
        %733 = vmatpush.xpose.msra.mxu0 0.0
        %734 = vmatpush.xpose.msra.mxu0 0.0
        %735 = vmatpush.xpose.msra.mxu0 0.0
        %736 = vmatpush.xpose.msra.mxu0 0.0
        %737 = vmatpush.xpose.msra.mxu0 %v720
        %738 = vmatmul.f32.gmra.mxu0 %v718
        %v739 = vpop.f32.mrf.mxu0
        %v740 = vadd.f32 0.0, %v739
        %741 = vdwg.mxu0
        %742 = vrot.lane.b32.xlu0 %v678, 96
        %v743 = vpop.permute.xlu0 %742
        %v744 = vsel %vm691, %v678, 0
        %v746 = vsel %vm691, %v743, 0
        %748 = vmatpush.xpose.msra.mxu0 0.0
        %749 = vmatpush.xpose.msra.mxu0 0.0
        %750 = vmatpush.xpose.msra.mxu0 0.0
        %751 = vmatpush.xpose.msra.mxu0 0.0
        %752 = vmatpush.xpose.msra.mxu0 0.0
        %753 = vmatpush.xpose.msra.mxu0 0.0
        %754 = vmatpush.xpose.msra.mxu0 0.0
        %755 = vmatpush.xpose.msra.mxu0 0.0
        %756 = vmatpush.xpose.msra.mxu0 0.0
        %757 = vmatpush.xpose.msra.mxu0 0.0
        %758 = vmatpush.xpose.msra.mxu0 0.0
        %759 = vmatpush.xpose.msra.mxu0 0.0
        %760 = vmatpush.xpose.msra.mxu0 0.0
        %761 = vmatpush.xpose.msra.mxu0 0.0
        %762 = vmatpush.xpose.msra.mxu0 0.0
        %763 = vmatpush.xpose.msra.mxu0 %v746
        %764 = vmatmul.f32.gmra.mxu0 %v744
        %v765 = vpop.f32.mrf.mxu0
        %v766 = vadd.f32 0.0, %v765
        %767 = vdwg.mxu0
        %768 = vrot.lane.b32.xlu0 %v680, 96
        %v769 = vpop.permute.xlu0 %768
        %v770 = vsel %vm691, %v680, 0
        %v772 = vsel %vm691, %v769, 0
        %774 = vmatpush.xpose.msra.mxu0 0.0
        %775 = vmatpush.xpose.msra.mxu0 0.0
        %776 = vmatpush.xpose.msra.mxu0 0.0
        %777 = vmatpush.xpose.msra.mxu0 0.0
        %778 = vmatpush.xpose.msra.mxu0 0.0
        %779 = vmatpush.xpose.msra.mxu0 0.0
        %780 = vmatpush.xpose.msra.mxu0 0.0
        %781 = vmatpush.xpose.msra.mxu0 0.0
        %782 = vmatpush.xpose.msra.mxu0 0.0
        %783 = vmatpush.xpose.msra.mxu0 0.0
        %784 = vmatpush.xpose.msra.mxu0 0.0
        %785 = vmatpush.xpose.msra.mxu0 0.0
        %786 = vmatpush.xpose.msra.mxu0 0.0
        %787 = vmatpush.xpose.msra.mxu0 0.0
        %788 = vmatpush.xpose.msra.mxu0 0.0
        %789 = vmatpush.xpose.msra.mxu0 %v772
        %790 = vmatmul.f32.gmra.mxu0 %v770
        %v791 = vpop.f32.mrf.mxu0
        %v792 = vadd.f32 0.0, %v791
        %793 = vdwg.mxu0
        %794 = vrot.lane.b32.xlu0 %v682, 96
        %v795 = vpop.permute.xlu0 %794
        %v796 = vsel %vm691, %v682, 0
        %v798 = vsel %vm691, %v795, 0
        %800 = vmatpush.xpose.msra.mxu0 0.0
        %801 = vmatpush.xpose.msra.mxu0 0.0
        %802 = vmatpush.xpose.msra.mxu0 0.0
        %803 = vmatpush.xpose.msra.mxu0 0.0
        %804 = vmatpush.xpose.msra.mxu0 0.0
        %805 = vmatpush.xpose.msra.mxu0 0.0
        %806 = vmatpush.xpose.msra.mxu0 0.0
        %807 = vmatpush.xpose.msra.mxu0 0.0
        %808 = vmatpush.xpose.msra.mxu0 0.0
        %809 = vmatpush.xpose.msra.mxu0 0.0
        %810 = vmatpush.xpose.msra.mxu0 0.0
        %811 = vmatpush.xpose.msra.mxu0 0.0
        %812 = vmatpush.xpose.msra.mxu0 0.0
        %813 = vmatpush.xpose.msra.mxu0 0.0
        %814 = vmatpush.xpose.msra.mxu0 0.0
        %815 = vmatpush.xpose.msra.mxu0 %v798
        %816 = vmatmul.f32.gmra.mxu0 %v796
        %v817 = vpop.f32.mrf.mxu0
        %v818 = vadd.f32 0.0, %v817
        %819 = vdwg.mxu0
        %820 = vrot.lane.b32.xlu0 %v684, 96
        %v821 = vpop.permute.xlu0 %820
        %v822 = vsel %vm691, %v684, 0
        %v824 = vsel %vm691, %v821, 0
        %826 = vmatpush.xpose.msra.mxu0 0.0
        %827 = vmatpush.xpose.msra.mxu0 0.0
        %828 = vmatpush.xpose.msra.mxu0 0.0
        %829 = vmatpush.xpose.msra.mxu0 0.0
        %830 = vmatpush.xpose.msra.mxu0 0.0
        %831 = vmatpush.xpose.msra.mxu0 0.0
        %832 = vmatpush.xpose.msra.mxu0 0.0
        %833 = vmatpush.xpose.msra.mxu0 0.0
        %834 = vmatpush.xpose.msra.mxu0 0.0
        %835 = vmatpush.xpose.msra.mxu0 0.0
        %836 = vmatpush.xpose.msra.mxu0 0.0
        %837 = vmatpush.xpose.msra.mxu0 0.0
        %838 = vmatpush.xpose.msra.mxu0 0.0
        %839 = vmatpush.xpose.msra.mxu0 0.0
        %840 = vmatpush.xpose.msra.mxu0 0.0
        %841 = vmatpush.xpose.msra.mxu0 %v824
        %842 = vmatmul.f32.gmra.mxu0 %v822
        %v843 = vpop.f32.mrf.mxu0
        %v844 = vadd.f32 0.0, %v843
        %845 = vdwg.mxu0
        %846 = vrot.lane.b32.xlu0 %v686, 96
        %v847 = vpop.permute.xlu0 %846
        %v848 = vsel %vm691, %v686, 0
        %v850 = vsel %vm691, %v847, 0
        %852 = vmatpush.xpose.msra.mxu0 0.0
        %853 = vmatpush.xpose.msra.mxu0 0.0
        %854 = vmatpush.xpose.msra.mxu0 0.0
        %855 = vmatpush.xpose.msra.mxu0 0.0
        %856 = vmatpush.xpose.msra.mxu0 0.0
        %857 = vmatpush.xpose.msra.mxu0 0.0
        %858 = vmatpush.xpose.msra.mxu0 0.0
        %859 = vmatpush.xpose.msra.mxu0 0.0
        %860 = vmatpush.xpose.msra.mxu0 0.0
        %861 = vmatpush.xpose.msra.mxu0 0.0
        %862 = vmatpush.xpose.msra.mxu0 0.0
        %863 = vmatpush.xpose.msra.mxu0 0.0
        %864 = vmatpush.xpose.msra.mxu0 0.0
        %865 = vmatpush.xpose.msra.mxu0 0.0
        %866 = vmatpush.xpose.msra.mxu0 0.0
        %867 = vmatpush.xpose.msra.mxu0 %v850
        %868 = vmatmul.f32.gmra.mxu0 %v848
        %v869 = vpop.f32.mrf.mxu0
        %v870 = vadd.f32 0.0, %v869
        %871 = vdwg.mxu0
        %872 = vrot.lane.b32.xlu0 %v688, 96
        %v873 = vpop.permute.xlu0 %872
        %v874 = vsel %vm691, %v688, 0
        %v876 = vsel %vm691, %v873, 0
        %878 = vmatpush.xpose.msra.mxu0 0.0
        %879 = vmatpush.xpose.msra.mxu0 0.0
        %880 = vmatpush.xpose.msra.mxu0 0.0
        %881 = vmatpush.xpose.msra.mxu0 0.0
        %882 = vmatpush.xpose.msra.mxu0 0.0
        %883 = vmatpush.xpose.msra.mxu0 0.0
        %884 = vmatpush.xpose.msra.mxu0 0.0
        %885 = vmatpush.xpose.msra.mxu0 0.0
        %886 = vmatpush.xpose.msra.mxu0 0.0
        %887 = vmatpush.xpose.msra.mxu0 0.0
        %888 = vmatpush.xpose.msra.mxu0 0.0
        %889 = vmatpush.xpose.msra.mxu0 0.0
        %890 = vmatpush.xpose.msra.mxu0 0.0
        %891 = vmatpush.xpose.msra.mxu0 0.0
        %892 = vmatpush.xpose.msra.mxu0 0.0
        %893 = vmatpush.xpose.msra.mxu0 %v876
        %894 = vmatmul.f32.gmra.mxu0 %v874
        %v895 = vpop.f32.mrf.mxu0
        %v896 = vadd.f32 0.0, %v895
        %897 = vdwg.mxu0
        %v898 = vsel %vm691, %v714, -inf
        %899 = vmax.xlane.f32.xlu0 %v898
        %v900 = vpop.xlane.xlu0 %899
        %v901 = vsel %vm691, %v740, -inf
        %902 = vmax.xlane.f32.xlu0 %v901
        %v903 = vpop.xlane.xlu0 %902
        %v904 = vsel %vm691, %v766, -inf
        %905 = vmax.xlane.f32.xlu0 %v904
        %v906 = vpop.xlane.xlu0 %905
        %v907 = vsel %vm691, %v792, -inf
        %908 = vmax.xlane.f32.xlu0 %v907
        %v909 = vpop.xlane.xlu0 %908
        %v910 = vsel %vm691, %v818, -inf
        %911 = vmax.xlane.f32.xlu0 %v910
        %v912 = vpop.xlane.xlu0 %911
        %v913 = vsel %vm691, %v844, -inf
        %914 = vmax.xlane.f32.xlu0 %v913
        %v915 = vpop.xlane.xlu0 %914
        %v916 = vsel %vm691, %v870, -inf
        %917 = vmax.xlane.f32.xlu0 %v916
        %v918 = vpop.xlane.xlu0 %917
        %v919 = vsel %vm691, %v896, -inf
        %920 = vmax.xlane.f32.xlu0 %v919
        %v921 = vpop.xlane.xlu0 %920
        %v922 = vsub.f32 %v714, %v900
        %v923 = vsub.f32 %v740, %v903
        %v924 = vsub.f32 %v766, %v906
        %v925 = vsub.f32 %v792, %v909
        %v926 = vsub.f32 %v818, %v912
        %v927 = vsub.f32 %v844, %v915
        %v928 = vsub.f32 %v870, %v918
        %v929 = vsub.f32 %v896, %v921
        %v930 = vmul.f32 %v922, 1.442695
        %v931 = vpow.pop %v930
        %v932 = vmul.f32 %v923, 1.442695
        %v933 = vpow.pop %v932
        %v934 = vmul.f32 %v924, 1.442695
        %v935 = vpow.pop %v934
        %v936 = vmul.f32 %v925, 1.442695
        %v937 = vpow.pop %v936
        %v938 = vmul.f32 %v926, 1.442695
        %v939 = vpow.pop %v938
        %v940 = vmul.f32 %v927, 1.442695
        %v941 = vpow.pop %v940
        %v942 = vmul.f32 %v928, 1.442695
        %v943 = vpow.pop %v942
        %v944 = vmul.f32 %v929, 1.442695
        %v945 = vpow.pop %v944
        %v946 = vsel %vm691, %v931, 0.0
        %947 = vadd.xlane.f32.xlu0 %v946
        %v948 = vpop.xlane.xlu0 %947
        %v949 = vsel %vm691, %v933, 0.0
        %950 = vadd.xlane.f32.xlu0 %v949
        %v951 = vpop.xlane.xlu0 %950
        %v952 = vsel %vm691, %v935, 0.0
        %953 = vadd.xlane.f32.xlu0 %v952
        %v954 = vpop.xlane.xlu0 %953
        %v955 = vsel %vm691, %v937, 0.0
        %956 = vadd.xlane.f32.xlu0 %v955
        %v957 = vpop.xlane.xlu0 %956
        %v958 = vsel %vm691, %v939, 0.0
        %959 = vadd.xlane.f32.xlu0 %v958
        %v960 = vpop.xlane.xlu0 %959
        %v961 = vsel %vm691, %v941, 0.0
        %962 = vadd.xlane.f32.xlu0 %v961
        %v963 = vpop.xlane.xlu0 %962
        %v964 = vsel %vm691, %v943, 0.0
        %965 = vadd.xlane.f32.xlu0 %v964
        %v966 = vpop.xlane.xlu0 %965
        %v967 = vsel %vm691, %v945, 0.0
        %968 = vadd.xlane.f32.xlu0 %v967
        %v969 = vpop.xlane.xlu0 %968
        %v970 = vrcp.pop %v948
        %v971 = vmul.f32 %v948, %v970
        %v972 = vsub.f32 1.0, %v971
        %v973 = vmul.f32 %v970, %v972
        %v974 = vadd.f32 %v970, %v973
        %vm975 = vweird.f32 %v948
        %vm976 = vweird.f32 %v970
        %vm977 = vmor %vm975, %vm976
        %v978 = vsel %vm977, %v970, %v974
        %v979 = vand.u32 2147483647, %v948
        %vm980 = vcmp.eq.f32.partialorder %v979, 8.507059e+37
        %v981 = vand.u32 %v948, 2147483648
        %v982 = vor.u32 1.1754944e-38, %v981
        %v983 = vsel %vm980, %v982, %v978
        %v984 = vmul.f32 %v931, %v983
        %v985 = vrcp.pop %v951
        %v986 = vmul.f32 %v951, %v985
        %v987 = vsub.f32 1.0, %v986
        %v988 = vmul.f32 %v985, %v987
        %v989 = vadd.f32 %v985, %v988
        %vm990 = vweird.f32 %v951
        %vm991 = vweird.f32 %v985
        %vm992 = vmor %vm990, %vm991
        %v993 = vsel %vm992, %v985, %v989
        %v994 = vand.u32 2147483647, %v951
        %vm995 = vcmp.eq.f32.partialorder %v994, 8.507059e+37
        %v996 = vand.u32 %v951, 2147483648
        %v997 = vor.u32 1.1754944e-38, %v996
        %v998 = vsel %vm995, %v997, %v993
        %v999 = vmul.f32 %v933, %v998
        %v1000 = vrcp.pop %v954
        %v1001 = vmul.f32 %v954, %v1000
        %v1002 = vsub.f32 1.0, %v1001
        %v1003 = vmul.f32 %v1000, %v1002
        %v1004 = vadd.f32 %v1000, %v1003
        %vm1005 = vweird.f32 %v954
        %vm1006 = vweird.f32 %v1000
        %vm1007 = vmor %vm1005, %vm1006
        %v1008 = vsel %vm1007, %v1000, %v1004
        %v1009 = vand.u32 2147483647, %v954
        %vm1010 = vcmp.eq.f32.partialorder %v1009, 8.507059e+37
        %v1011 = vand.u32 %v954, 2147483648
        %v1012 = vor.u32 1.1754944e-38, %v1011
        %v1013 = vsel %vm1010, %v1012, %v1008
        %v1014 = vmul.f32 %v935, %v1013
        %v1015 = vrcp.pop %v957
        %v1016 = vmul.f32 %v957, %v1015
        %v1017 = vsub.f32 1.0, %v1016
        %v1018 = vmul.f32 %v1015, %v1017
        %v1019 = vadd.f32 %v1015, %v1018
        %vm1020 = vweird.f32 %v957
        %vm1021 = vweird.f32 %v1015
        %vm1022 = vmor %vm1020, %vm1021
        %v1023 = vsel %vm1022, %v1015, %v1019
        %v1024 = vand.u32 2147483647, %v957
        %vm1025 = vcmp.eq.f32.partialorder %v1024, 8.507059e+37
        %v1026 = vand.u32 %v957, 2147483648
        %v1027 = vor.u32 1.1754944e-38, %v1026
        %v1028 = vsel %vm1025, %v1027, %v1023
        %v1029 = vmul.f32 %v937, %v1028
        %v1030 = vrcp.pop %v960
        %v1031 = vmul.f32 %v960, %v1030
        %v1032 = vsub.f32 1.0, %v1031
        %v1033 = vmul.f32 %v1030, %v1032
        %v1034 = vadd.f32 %v1030, %v1033
        %vm1035 = vweird.f32 %v960
        %vm1036 = vweird.f32 %v1030
        %vm1037 = vmor %vm1035, %vm1036
        %v1038 = vsel %vm1037, %v1030, %v1034
        %v1039 = vand.u32 2147483647, %v960
        %vm1040 = vcmp.eq.f32.partialorder %v1039, 8.507059e+37
        %v1041 = vand.u32 %v960, 2147483648
        %v1042 = vor.u32 1.1754944e-38, %v1041
        %v1043 = vsel %vm1040, %v1042, %v1038
        %v1044 = vmul.f32 %v939, %v1043
        %v1045 = vrcp.pop %v963
        %v1046 = vmul.f32 %v963, %v1045
        %v1047 = vsub.f32 1.0, %v1046
        %v1048 = vmul.f32 %v1045, %v1047
        %v1049 = vadd.f32 %v1045, %v1048
        %vm1050 = vweird.f32 %v963
        %vm1051 = vweird.f32 %v1045
        %vm1052 = vmor %vm1050, %vm1051
        %v1053 = vsel %vm1052, %v1045, %v1049
        %v1054 = vand.u32 2147483647, %v963
        %vm1055 = vcmp.eq.f32.partialorder %v1054, 8.507059e+37
        %v1056 = vand.u32 %v963, 2147483648
        %v1057 = vor.u32 1.1754944e-38, %v1056
        %v1058 = vsel %vm1055, %v1057, %v1053
        %v1059 = vmul.f32 %v941, %v1058
        %v1060 = vrcp.pop %v966
        %v1061 = vmul.f32 %v966, %v1060
        %v1062 = vsub.f32 1.0, %v1061
        %v1063 = vmul.f32 %v1060, %v1062
        %v1064 = vadd.f32 %v1060, %v1063
        %vm1065 = vweird.f32 %v966
        %vm1066 = vweird.f32 %v1060
        %vm1067 = vmor %vm1065, %vm1066
        %v1068 = vsel %vm1067, %v1060, %v1064
        %v1069 = vand.u32 2147483647, %v966
        %vm1070 = vcmp.eq.f32.partialorder %v1069, 8.507059e+37
        %v1071 = vand.u32 %v966, 2147483648
        %v1072 = vor.u32 1.1754944e-38, %v1071
        %v1073 = vsel %vm1070, %v1072, %v1068
        %v1074 = vmul.f32 %v943, %v1073
        %v1075 = vrcp.pop %v969
        %v1076 = vmul.f32 %v969, %v1075
        %v1077 = vsub.f32 1.0, %v1076
        %v1078 = vmul.f32 %v1075, %v1077
        %v1079 = vadd.f32 %v1075, %v1078
        %vm1080 = vweird.f32 %v969
        %vm1081 = vweird.f32 %v1075
        %vm1082 = vmor %vm1080, %vm1081
        %v1083 = vsel %vm1082, %v1075, %v1079
        %v1084 = vand.u32 2147483647, %v969
        %vm1085 = vcmp.eq.f32.partialorder %v1084, 8.507059e+37
        %v1086 = vand.u32 %v969, 2147483648
        %v1087 = vor.u32 1.1754944e-38, %v1086
        %v1088 = vsel %vm1085, %v1087, %v1083
        %v1089 = vmul.f32 %v945, %v1088
        %1090 = vst.msk [vmem:[%s462] sm:$0xff] %vm691, %v984
        %1091 = vst.msk [vmem:[%s462 + $0x8] sm:$0xff] %vm691, %v999
        %1092 = vst.msk [vmem:[%s462 + $0x10] sm:$0xff] %vm691, %v1014
        %1093 = vst.msk [vmem:[%s462 + $0x18] sm:$0xff] %vm691, %v1029
        %1094 = vst.msk [vmem:[%s462 + $0x20] sm:$0xff] %vm691, %v1044
        %1095 = vst.msk [vmem:[%s462 + $0x28] sm:$0xff] %vm691, %v1059
        %1096 = vst.msk [vmem:[%s462 + $0x30] sm:$0xff] %vm691, %v1074
        %1097 = vst.msk [vmem:[%s462 + $0x38] sm:$0xff] %vm691, %v1089
        %1098 = vrot.lane.b32.xlu0 %v670, 64
        %v1099 = vpop.permute.xlu0 %1098
        %v1102 = vsel %vm691, %v984, 0
        %1104 = vmatpush.msra.mxu0 0.0
        %1105 = vmatpush.msra.mxu0 0.0
        %1106 = vmatpush.msra.mxu0 0.0
        %1107 = vmatpush.msra.mxu0 0.0
        %1108 = vmatpush.msra.mxu0 0.0
        %1109 = vmatpush.msra.mxu0 0.0
        %1110 = vmatpush.msra.mxu0 0.0
        %1111 = vmatpush.msra.mxu0 0.0
        %1112 = vmatpush.msra.mxu0 0.0
        %1113 = vmatpush.msra.mxu0 0.0
        %1114 = vmatpush.msra.mxu0 0.0
        %1115 = vmatpush.msra.mxu0 0.0
        %1116 = vmatpush.msra.mxu0 0.0
        %1117 = vmatpush.msra.mxu0 0.0
        %1118 = vmatpush.msra.mxu0 0.0
        %1119 = vmatpush.msra.mxu0 %v1099
        %1120 = vmatmul.f32.gmra.mxu0 %v1102
        %v1121 = vpop.f32.mrf.mxu0
        %v1122 = vadd.f32 0.0, %v1121
        %1123 = vdwg.mxu0
        %1124 = vrot.lane.b32.xlu0 %v673, 64
        %v1125 = vpop.permute.xlu0 %1124
        %v1128 = vsel %vm691, %v999, 0
        %1130 = vmatpush.msra.mxu0 0.0
        %1131 = vmatpush.msra.mxu0 0.0
        %1132 = vmatpush.msra.mxu0 0.0
        %1133 = vmatpush.msra.mxu0 0.0
        %1134 = vmatpush.msra.mxu0 0.0
        %1135 = vmatpush.msra.mxu0 0.0
        %1136 = vmatpush.msra.mxu0 0.0
        %1137 = vmatpush.msra.mxu0 0.0
        %1138 = vmatpush.msra.mxu0 0.0
        %1139 = vmatpush.msra.mxu0 0.0
        %1140 = vmatpush.msra.mxu0 0.0
        %1141 = vmatpush.msra.mxu0 0.0
        %1142 = vmatpush.msra.mxu0 0.0
        %1143 = vmatpush.msra.mxu0 0.0
        %1144 = vmatpush.msra.mxu0 0.0
        %1145 = vmatpush.msra.mxu0 %v1125
        %1146 = vmatmul.f32.gmra.mxu0 %v1128
        %v1147 = vpop.f32.mrf.mxu0
        %v1148 = vadd.f32 0.0, %v1147
        %1149 = vdwg.mxu0
        %1150 = vrot.lane.b32.xlu0 %v678, 64
        %v1151 = vpop.permute.xlu0 %1150
        %v1154 = vsel %vm691, %v1014, 0
        %1156 = vmatpush.msra.mxu0 0.0
        %1157 = vmatpush.msra.mxu0 0.0
        %1158 = vmatpush.msra.mxu0 0.0
        %1159 = vmatpush.msra.mxu0 0.0
        %1160 = vmatpush.msra.mxu0 0.0
        %1161 = vmatpush.msra.mxu0 0.0
        %1162 = vmatpush.msra.mxu0 0.0
        %1163 = vmatpush.msra.mxu0 0.0
        %1164 = vmatpush.msra.mxu0 0.0
        %1165 = vmatpush.msra.mxu0 0.0
        %1166 = vmatpush.msra.mxu0 0.0
        %1167 = vmatpush.msra.mxu0 0.0
        %1168 = vmatpush.msra.mxu0 0.0
        %1169 = vmatpush.msra.mxu0 0.0
        %1170 = vmatpush.msra.mxu0 0.0
        %1171 = vmatpush.msra.mxu0 %v1151
        %1172 = vmatmul.f32.gmra.mxu0 %v1154
        %v1173 = vpop.f32.mrf.mxu0
        %v1174 = vadd.f32 0.0, %v1173
        %1175 = vdwg.mxu0
        %1176 = vrot.lane.b32.xlu0 %v680, 64
        %v1177 = vpop.permute.xlu0 %1176
        %v1180 = vsel %vm691, %v1029, 0
        %1182 = vmatpush.msra.mxu0 0.0
        %1183 = vmatpush.msra.mxu0 0.0
        %1184 = vmatpush.msra.mxu0 0.0
        %1185 = vmatpush.msra.mxu0 0.0
        %1186 = vmatpush.msra.mxu0 0.0
        %1187 = vmatpush.msra.mxu0 0.0
        %1188 = vmatpush.msra.mxu0 0.0
        %1189 = vmatpush.msra.mxu0 0.0
        %1190 = vmatpush.msra.mxu0 0.0
        %1191 = vmatpush.msra.mxu0 0.0
        %1192 = vmatpush.msra.mxu0 0.0
        %1193 = vmatpush.msra.mxu0 0.0
        %1194 = vmatpush.msra.mxu0 0.0
        %1195 = vmatpush.msra.mxu0 0.0
        %1196 = vmatpush.msra.mxu0 0.0
        %1197 = vmatpush.msra.mxu0 %v1177
        %1198 = vmatmul.f32.gmra.mxu0 %v1180
        %v1199 = vpop.f32.mrf.mxu0
        %v1200 = vadd.f32 0.0, %v1199
        %1201 = vdwg.mxu0
        %1202 = vrot.lane.b32.xlu0 %v682, 64
        %v1203 = vpop.permute.xlu0 %1202
        %v1206 = vsel %vm691, %v1044, 0
        %1208 = vmatpush.msra.mxu0 0.0
        %1209 = vmatpush.msra.mxu0 0.0
        %1210 = vmatpush.msra.mxu0 0.0
        %1211 = vmatpush.msra.mxu0 0.0
        %1212 = vmatpush.msra.mxu0 0.0
        %1213 = vmatpush.msra.mxu0 0.0
        %1214 = vmatpush.msra.mxu0 0.0
        %1215 = vmatpush.msra.mxu0 0.0
        %1216 = vmatpush.msra.mxu0 0.0
        %1217 = vmatpush.msra.mxu0 0.0
        %1218 = vmatpush.msra.mxu0 0.0
        %1219 = vmatpush.msra.mxu0 0.0
        %1220 = vmatpush.msra.mxu0 0.0
        %1221 = vmatpush.msra.mxu0 0.0
        %1222 = vmatpush.msra.mxu0 0.0
        %1223 = vmatpush.msra.mxu0 %v1203
        %1224 = vmatmul.f32.gmra.mxu0 %v1206
        %v1225 = vpop.f32.mrf.mxu0
        %v1226 = vadd.f32 0.0, %v1225
        %1227 = vdwg.mxu0
        %1228 = vrot.lane.b32.xlu0 %v684, 64
        %v1229 = vpop.permute.xlu0 %1228
        %v1232 = vsel %vm691, %v1059, 0
        %1234 = vmatpush.msra.mxu0 0.0
        %1235 = vmatpush.msra.mxu0 0.0
        %1236 = vmatpush.msra.mxu0 0.0
        %1237 = vmatpush.msra.mxu0 0.0
        %1238 = vmatpush.msra.mxu0 0.0
        %1239 = vmatpush.msra.mxu0 0.0
        %1240 = vmatpush.msra.mxu0 0.0
        %1241 = vmatpush.msra.mxu0 0.0
        %1242 = vmatpush.msra.mxu0 0.0
        %1243 = vmatpush.msra.mxu0 0.0
        %1244 = vmatpush.msra.mxu0 0.0
        %1245 = vmatpush.msra.mxu0 0.0
        %1246 = vmatpush.msra.mxu0 0.0
        %1247 = vmatpush.msra.mxu0 0.0
        %1248 = vmatpush.msra.mxu0 0.0
        %1249 = vmatpush.msra.mxu0 %v1229
        %1250 = vmatmul.f32.gmra.mxu0 %v1232
        %v1251 = vpop.f32.mrf.mxu0
        %v1252 = vadd.f32 0.0, %v1251
        %1253 = vdwg.mxu0
        %1254 = vrot.lane.b32.xlu0 %v686, 64
        %v1255 = vpop.permute.xlu0 %1254
        %v1258 = vsel %vm691, %v1074, 0
        %1260 = vmatpush.msra.mxu0 0.0
        %1261 = vmatpush.msra.mxu0 0.0
        %1262 = vmatpush.msra.mxu0 0.0
        %1263 = vmatpush.msra.mxu0 0.0
        %1264 = vmatpush.msra.mxu0 0.0
        %1265 = vmatpush.msra.mxu0 0.0
        %1266 = vmatpush.msra.mxu0 0.0
        %1267 = vmatpush.msra.mxu0 0.0
        %1268 = vmatpush.msra.mxu0 0.0
        %1269 = vmatpush.msra.mxu0 0.0
        %1270 = vmatpush.msra.mxu0 0.0
        %1271 = vmatpush.msra.mxu0 0.0
        %1272 = vmatpush.msra.mxu0 0.0
        %1273 = vmatpush.msra.mxu0 0.0
        %1274 = vmatpush.msra.mxu0 0.0
        %1275 = vmatpush.msra.mxu0 %v1255
        %1276 = vmatmul.f32.gmra.mxu0 %v1258
        %v1277 = vpop.f32.mrf.mxu0
        %v1278 = vadd.f32 0.0, %v1277
        %1279 = vdwg.mxu0
        %1280 = vrot.lane.b32.xlu0 %v688, 64
        %v1281 = vpop.permute.xlu0 %1280
        %v1284 = vsel %vm691, %v1089, 0
        %1286 = vmatpush.msra.mxu0 0.0
        %1287 = vmatpush.msra.mxu0 0.0
        %1288 = vmatpush.msra.mxu0 0.0
        %1289 = vmatpush.msra.mxu0 0.0
        %1290 = vmatpush.msra.mxu0 0.0
        %1291 = vmatpush.msra.mxu0 0.0
        %1292 = vmatpush.msra.mxu0 0.0
        %1293 = vmatpush.msra.mxu0 0.0
        %1294 = vmatpush.msra.mxu0 0.0
        %1295 = vmatpush.msra.mxu0 0.0
        %1296 = vmatpush.msra.mxu0 0.0
        %1297 = vmatpush.msra.mxu0 0.0
        %1298 = vmatpush.msra.mxu0 0.0
        %1299 = vmatpush.msra.mxu0 0.0
        %1300 = vmatpush.msra.mxu0 0.0
        %1301 = vmatpush.msra.mxu0 %v1281
        %1302 = vmatmul.f32.gmra.mxu0 %v1284
        %v1303 = vpop.f32.mrf.mxu0
        %v1304 = vadd.f32 0.0, %v1303
        %1305 = vdwg.mxu0
        %1308 = vrot.lane.b32.xlu0 %v1174, 8
        %v1309 = vpop.permute.xlu0 %1308
        %1310 = vrot.lane.b32.xlu0 %v1200, 8
        %v1311 = vpop.permute.xlu0 %1310
        %1316 = vrot.lane.b32.xlu0 %v1226, 16
        %v1317 = vpop.permute.xlu0 %1316
        %1318 = vrot.lane.b32.xlu0 %v1252, 16
        %v1319 = vpop.permute.xlu0 %1318
        %1324 = vrot.lane.b32.xlu0 %v1278, 24
        %v1325 = vpop.permute.xlu0 %1324
        %1326 = vrot.lane.b32.xlu0 %v1304, 24
        %v1327 = vpop.permute.xlu0 %1326
        %v1330 = vsel %vm691, %v1122, %v1309
        %v1331 = vsel %vm691, %v1148, %v1311
        %vm1332 = vcmask 130048
        %v1333 = vsel %vm1332, %v1330, %v1317
        %v1334 = vsel %vm1332, %v1331, %v1319
        %vm1335 = vcmask 195584
        %v1336 = vsel %vm1335, %v1333, %v1325
        %v1337 = vsel %vm1335, %v1334, %v1327
        %v1338 = vld [vmem:[%s472] sm:$0xff]
        %v1339 = vld [vmem:[%s472 + $0x8] sm:$0xff]
        %v1340 = vld [vmem:[%s472 + $0x10] sm:$0xff]
        %v1341 = vld [vmem:[%s472 + $0x18] sm:$0xff]
        %v1342 = vperm.slane %v639, 2
        %v1344 = vsel %vm645, %v1336, 0
        %v1347 = vsel %vm645, %v1337, 0
        %1349 = vmatpush.msra.mxu0 0.0
        %1350 = vmatpush.msra.mxu0 0.0
        %1351 = vmatpush.msra.mxu0 0.0
        %1352 = vmatpush.msra.mxu0 0.0
        %1353 = vmatpush.msra.mxu0 0.0
        %1354 = vmatpush.msra.mxu0 0.0
        %1355 = vmatpush.msra.mxu0 0.0
        %1356 = vmatpush.msra.mxu0 0.0
        %1357 = vmatpush.msra.mxu0 0.0
        %1358 = vmatpush.msra.mxu0 0.0
        %1359 = vmatpush.msra.mxu0 0.0
        %1360 = vmatpush.msra.mxu0 0.0
        %1361 = vmatpush.msra.mxu0 %v1341
        %1362 = vmatpush.msra.mxu0 %v1340
        %1363 = vmatpush.msra.mxu0 %v1339
        %1364 = vmatpush.msra.mxu0 %v1338
        %1365 = vmatmul.f32.gmra.mxu0 %v1344
        %v1366 = vpop.f32.mrf.mxu0
        %v1367 = vadd.f32 %v1342, %v1366
        %1368 = vmatmul.f32.gmra.mxu0 %v1347
        %v1369 = vpop.f32.mrf.mxu0
        %v1370 = vadd.f32 %v1342, %v1369
        %1371 = vdwg.mxu0
        %v1372 = vadd.f32 %v637, %v1367
        %v1373 = vadd.f32 %v638, %v1370
        %v1374 = vsel %vm645, %v1372, 0.0
        %1375 = vadd.xlane.f32.xlu0 %v1374
        %v1376 = vpop.xlane.xlu0 %1375
        %v1377 = vsel %vm645, %v1373, 0.0
        %1378 = vadd.xlane.f32.xlu0 %v1377
        %v1379 = vpop.xlane.xlu0 %1378
        %v1380 = vrcp.pop 32.0
        %v1381 = vmul.f32 32.0, %v1380
        %v1382 = vsub.f32 1.0, %v1381
        %v1383 = vmul.f32 %v1380, %v1382
        %v1384 = vadd.f32 %v1380, %v1383
        %vm1385 = vweird.f32 %v1380
        %v1386 = vsel %vm1385, %v1380, %v1384
        %v1387 = vmul.f32 %v1376, %v1386
        %v1388 = vmul.f32 %v1379, %v1386
        %v1389 = vsub.f32 %v1372, %v1387
        %v1390 = vsub.f32 %v1373, %v1388
        %v1391 = vmul.f32 %v1389, %v1389
        %v1392 = vmul.f32 %v1390, %v1390
        %v1393 = vsel %vm645, %v1391, 0.0
        %1394 = vadd.xlane.f32.xlu0 %v1393
        %v1395 = vpop.xlane.xlu0 %1394
        %v1396 = vsel %vm645, %v1392, 0.0
        %1397 = vadd.xlane.f32.xlu0 %v1396
        %v1398 = vpop.xlane.xlu0 %1397
        %v1399 = vmul.f32 %v1395, %v1386
        %v1400 = vmul.f32 %v1398, %v1386
        %v1401 = vadd.f32 %v1399, 1e-05
        %v1402 = vadd.f32 %v1400, 1e-05
        %v1403 = vrsqrt.pop %v1401
        %v1404 = vmul.f32 %v1403, %v1401
        %v1405 = vmul.f32 %v1404, %v1403
        %v1406 = vmul.f32 0.5, %v1405
        %v1407 = vsub.f32 1.5, %v1406
        %v1408 = vmul.f32 %v1403, %v1407
        %vm1409 = vweird.f32 %v1401
        %vm1410 = vweird.f32 %v1403
        %vm1411 = vmor %vm1409, %vm1410
        %v1412 = vsel %vm1411, %v1403, %v1408
        %v1413 = vrsqrt.pop %v1402
        %v1414 = vmul.f32 %v1413, %v1402
        %v1415 = vmul.f32 %v1414, %v1413
        %v1416 = vmul.f32 0.5, %v1415
        %v1417 = vsub.f32 1.5, %v1416
        %v1418 = vmul.f32 %v1413, %v1417
        %vm1419 = vweird.f32 %v1402
        %vm1420 = vweird.f32 %v1413
        %vm1421 = vmor %vm1419, %vm1420
        %v1422 = vsel %vm1421, %v1413, %v1418
        %v1423 = vmul.f32 %v1389, %v1412
        %v1424 = vmul.f32 %v1390, %v1422
        %v1425 = vperm.slane %v639, 4
        %v1426 = vmul.f32 %v1423, %v1425
        %v1427 = vmul.f32 %v1424, %v1425
        %v1428 = vperm.slane %v639, 5
        %v1429 = vadd.f32 %v1426, %v1428
        %v1430 = vadd.f32 %v1427, %v1428
        %v1431 = vld [vmem:[%s477] sm:$0xff]
        %v1432 = vld [vmem:[%s477 + $0x8] sm:$0xff]
        %v1433 = vld [vmem:[%s477 + $0x10] sm:$0xff]
        %v1434 = vld [vmem:[%s477 + $0x18] sm:$0xff]
        %v1435 = vperm.slane %v639, 1
        %v1437 = vsel %vm645, %v1429, 0
        %v1440 = vsel %vm645, %v1430, 0
        %1442 = vmatpush.msra.mxu0 0.0
        %1443 = vmatpush.msra.mxu0 0.0
        %1444 = vmatpush.msra.mxu0 0.0
        %1445 = vmatpush.msra.mxu0 0.0
        %1446 = vmatpush.msra.mxu0 0.0
        %1447 = vmatpush.msra.mxu0 0.0
        %1448 = vmatpush.msra.mxu0 0.0
        %1449 = vmatpush.msra.mxu0 0.0
        %1450 = vmatpush.msra.mxu0 0.0
        %1451 = vmatpush.msra.mxu0 0.0
        %1452 = vmatpush.msra.mxu0 0.0
        %1453 = vmatpush.msra.mxu0 0.0
        %1454 = vmatpush.msra.mxu0 %v1434
        %1455 = vmatpush.msra.mxu0 %v1433
        %1456 = vmatpush.msra.mxu0 %v1432
        %1457 = vmatpush.msra.mxu0 %v1431
        %1458 = vmatmul.f32.gmra.mxu0 %v1437
        %v1459 = vpop.f32.mrf.mxu0
        %v1460 = vadd.f32 %v1435, %v1459
        %1461 = vmatmul.f32.gmra.mxu0 %v1440
        %v1462 = vpop.f32.mrf.mxu0
        %v1463 = vadd.f32 %v1435, %v1462
        %1464 = vdwg.mxu0
        %v1465 = vmax.f32 %v1460, 0.0
        %v1466 = vmax.f32 %v1463, 0.0
        %v1467 = vld [vmem:[%s482] sm:$0xff]
        %v1468 = vld [vmem:[%s482 + $0x8] sm:$0xff]
        %v1469 = vld [vmem:[%s482 + $0x10] sm:$0xff]
        %v1470 = vld [vmem:[%s482 + $0x18] sm:$0xff]
        %v1471 = vld [vmem:[%s482 + $0x20] sm:$0xff]
        %v1472 = vld [vmem:[%s482 + $0x28] sm:$0xff]
        %v1473 = vld [vmem:[%s482 + $0x30] sm:$0xff]
        %v1474 = vld [vmem:[%s482 + $0x38] sm:$0xff]
        %v1475 = vld [vmem:[%s482 + $0x40] sm:$0xff]
        %v1476 = vld [vmem:[%s482 + $0x48] sm:$0xff]
        %v1477 = vld [vmem:[%s482 + $0x50] sm:$0xff]
        %v1478 = vld [vmem:[%s482 + $0x58] sm:$0xff]
        %v1479 = vld [vmem:[%s482 + $0x60] sm:$0xff]
        %v1480 = vld [vmem:[%s482 + $0x68] sm:$0xff]
        %v1481 = vld [vmem:[%s482 + $0x70] sm:$0xff]
        %v1482 = vld [vmem:[%s482 + $0x78] sm:$0xff]
        %v1483 = vperm.slane %v639, 3
        %1484 = vmatpush.msra.mxu0 %v1482
        %1485 = vmatpush.msra.mxu0 %v1481
        %1486 = vmatpush.msra.mxu0 %v1480
        %1487 = vmatpush.msra.mxu0 %v1479
        %1488 = vmatpush.msra.mxu0 %v1478
        %1489 = vmatpush.msra.mxu0 %v1477
        %1490 = vmatpush.msra.mxu0 %v1476
        %1491 = vmatpush.msra.mxu0 %v1475
        %1492 = vmatpush.msra.mxu0 %v1474
        %1493 = vmatpush.msra.mxu0 %v1473
        %1494 = vmatpush.msra.mxu0 %v1472
        %1495 = vmatpush.msra.mxu0 %v1471
        %1496 = vmatpush.msra.mxu0 %v1470
        %1497 = vmatpush.msra.mxu0 %v1469
        %1498 = vmatpush.msra.mxu0 %v1468
        %1499 = vmatpush.msra.mxu0 %v1467
        %1500 = vmatmul.f32.gmra.mxu0 %v1465
        %v1501 = vpop.f32.mrf.mxu0
        %v1502 = vadd.f32 %v1483, %v1501
        %1503 = vmatmul.f32.gmra.mxu0 %v1466
        %v1504 = vpop.f32.mrf.mxu0
        %v1505 = vadd.f32 %v1483, %v1504
        %1506 = vdwg.mxu0
        %v1507 = vadd.f32 %v1429, %v1502
        %v1508 = vadd.f32 %v1430, %v1505
        %v1509 = vsel %vm645, %v1507, 0.0
        %1510 = vadd.xlane.f32.xlu0 %v1509
        %v1511 = vpop.xlane.xlu0 %1510
        %v1512 = vsel %vm645, %v1508, 0.0
        %1513 = vadd.xlane.f32.xlu0 %v1512
        %v1514 = vpop.xlane.xlu0 %1513
        %v1515 = vmul.f32 %v1511, %v1386
        %v1516 = vmul.f32 %v1514, %v1386
        %v1517 = vsub.f32 %v1507, %v1515
        %v1518 = vsub.f32 %v1508, %v1516
        %v1519 = vmul.f32 %v1517, %v1517
        %v1520 = vmul.f32 %v1518, %v1518
        %v1521 = vsel %vm645, %v1519, 0.0
        %1522 = vadd.xlane.f32.xlu0 %v1521
        %v1523 = vpop.xlane.xlu0 %1522
        %v1524 = vsel %vm645, %v1520, 0.0
        %1525 = vadd.xlane.f32.xlu0 %v1524
        %v1526 = vpop.xlane.xlu0 %1525
        %v1527 = vmul.f32 %v1523, %v1386
        %v1528 = vmul.f32 %v1526, %v1386
        %v1529 = vadd.f32 %v1527, 1e-05
        %v1530 = vadd.f32 %v1528, 1e-05
        %v1531 = vrsqrt.pop %v1529
        %v1532 = vmul.f32 %v1531, %v1529
        %v1533 = vmul.f32 %v1532, %v1531
        %v1534 = vmul.f32 0.5, %v1533
        %v1535 = vsub.f32 1.5, %v1534
        %v1536 = vmul.f32 %v1531, %v1535
        %vm1537 = vweird.f32 %v1529
        %vm1538 = vweird.f32 %v1531
        %vm1539 = vmor %vm1537, %vm1538
        %v1540 = vsel %vm1539, %v1531, %v1536
        %v1541 = vrsqrt.pop %v1530
        %v1542 = vmul.f32 %v1541, %v1530
        %v1543 = vmul.f32 %v1542, %v1541
        %v1544 = vmul.f32 0.5, %v1543
        %v1545 = vsub.f32 1.5, %v1544
        %v1546 = vmul.f32 %v1541, %v1545
        %vm1547 = vweird.f32 %v1530
        %vm1548 = vweird.f32 %v1541
        %vm1549 = vmor %vm1547, %vm1548
        %v1550 = vsel %vm1549, %v1541, %v1546
        %v1551 = vmul.f32 %v1517, %v1540
        %v1552 = vmul.f32 %v1518, %v1550
        %v1553 = vperm.slane %v639, 6
        %v1554 = vmul.f32 %v1551, %v1553
        %v1555 = vmul.f32 %v1552, %v1553
        %v1556 = vperm.slane %v639, 7
        %v1557 = vadd.f32 %v1554, %v1556
        %v1558 = vadd.f32 %v1555, %v1556
        %1559 = vst.msk [vmem:[#allocation2] sm:$0xff] %vm645, %v1557
        %1560 = vst.msk [vmem:[#allocation2 + $0x8] sm:$0xff] %vm645, %v1558
        %p1561 = scmp.eq.s32.totalorder %s30, 1
        // Predicated region
        $region69: #{tpu_custom_call.1} parent=59 // pred_check
          %p1562 = pneg %p1561
        $region70: #{tpu_custom_call.1} parent=59 // pred_check_branch
          %1564 = sbr.rel (%p1562) target = $region72
        $region71: #{tpu_custom_call.1} parent=59 // pred_region
          %1565 = vst.msk [vmem:[#allocation6] sm:$0xff] %vm645, %v1557
          %1566 = vst.msk [vmem:[#allocation6 + $0x8] sm:$0xff] %vm645, %v1558
        $region72: #{tpu_custom_call.1} parent=59 // pred_fallthru
          _
        %s1567 = sand.u32 %s294, 1
        %s1568 = scalar_lea.sflag [#allocation8], %s1567
        %s1569 = sand.u32 %s294, 1
        %s1570 = smul.addr %s1569, 64
        %s1571 = scalar_lea.vmem [#allocation7], %s1570
        // Predicated region
        $region73: #{tpu_custom_call.1} parent=59 // pred_check
          %p1572 = pneg %p278
        $region74: #{tpu_custom_call.1} parent=59 // pred_check_branch
          %1574 = sbr.rel (%p1572) target = $region76
        $region75: #{tpu_custom_call.1} parent=59 // pred_region
          %1576 = vsyncadd [#allocation5], 0
          %s1577 = sshll.u32 [#allocation6], 4
          %s1578 = int_to_ptr.vmem [resolvable:$true] %s1577
          %s1579 = sshll.u32 %s10, 4
          %s1580 = int_to_ptr.hbm [resolvable:$true] %s1579
          %1585 = dma.vmem_to_hbm [thread:$0]  %s1578, 256, %s1580, [#allocation5], 128, 128, 8
        $region76: #{tpu_custom_call.1} parent=59 // pred_fallthru
          _
        // Predicated region
        $region77: #{tpu_custom_call.1} parent=59 // pred_check
          %p1586 = pneg %p304
        $region78: #{tpu_custom_call.1} parent=59 // pred_check_branch
          %1588 = sbr.rel (%p1586) target = $region80
        $region79: #{tpu_custom_call.1} parent=59 // pred_region
          %1590 = vsyncadd %s1568, 0
          %s1591 = smul.addr %s30, 8
          %s1592 = smul.addr %s1591, 8
          %s1593 = scalar_lea.hbm %s11, %s1592
          %s1594 = sshll.u32 %s1571, 4
          %s1595 = int_to_ptr.vmem [resolvable:$true] %s1594
          %s1596 = sshll.u32 %s1593, 4
          %s1597 = int_to_ptr.hbm [resolvable:$true] %s1596
          %1602 = dma.vmem_to_hbm [thread:$0]  %s1595, 1024, %s1597, %s1568, 128, 128, 8
        $region80: #{tpu_custom_call.1} parent=59 // pred_fallthru
          _
        // Predicated region
        $region81: #{tpu_custom_call.1} parent=59 // pred_check
          %p1603 = pneg %p278
        $region82: #{tpu_custom_call.1} parent=59 // pred_check_branch
          %1605 = sbr.rel (%p1603) target = $region84
        $region83: #{tpu_custom_call.1} parent=59 // pred_region
          %1607 = dma.done [#allocation5], 256
        $region84: #{tpu_custom_call.1} parent=59 // pred_fallthru
          _
      $region60: #{tpu_custom_call.1} parent=5 // pred_fallthru
        _
      %p1608 = scmp.le.s32.totalorder 2, %s25
      // Predicated region
      $region85: #{tpu_custom_call.1} parent=5 // pred_check
        %p1609 = pneg %p1608
      $region86: #{tpu_custom_call.1} parent=5 // pred_check_branch
        %1611 = sbr.rel (%p1609) target = $region88
      $region87: #{tpu_custom_call.1} parent=5 // pred_region
        %s1612 = ssub.s32 %s25, 2
        // Predicated region
        $region89: #{tpu_custom_call.1} parent=87 // pred_check
          %p1613 = pneg %p310
        $region90: #{tpu_custom_call.1} parent=87 // pred_check_branch
          %1615 = sbr.rel (%p1613) target = $region92
        $region91: #{tpu_custom_call.1} parent=87 // pred_region
          %s1616 = sand.u32 %s295, 1
          %s1617 = scalar_lea.sflag [#allocation8], %s1616
          %s1618 = sand.u32 %s295, 1
          %s1619 = smul.addr %s1618, 64
          %s1620 = scalar_lea.vmem [#allocation7], %s1619
          %1622 = dma.done %s1617, 1024
        $region92: #{tpu_custom_call.1} parent=87 // pred_fallthru
          _
      $region88: #{tpu_custom_call.1} parent=5 // pred_fallthru
        _
    $region6: #{tpu_custom_call.1} parent=1 // loop_footer
      %s29 = sadd.s32 1, %s25
    $region7: #{tpu_custom_call.1} parent=1 // loop_footer_branch
      %24 = sbr.rel target = $region3
    $region8: #{tpu_custom_call.1} parent=1 // loop_exit
      _
    %1623 = vsyncpa [#allocation4], 1
    %s1624 = scalar_lea.sflag [#allocation4], 1
    %1625 = vsyncpa %s1624, 1
    %1626 = vsyncpa [#allocation5], 1
    %s1627 = scalar_lea.sflag [#allocation5], 1
    %1628 = vsyncpa %s1627, 1
    %1629 = vsyncpa [#allocation8], 1
    %s1630 = scalar_lea.sflag [#allocation8], 1
    %1631 = vsyncpa %s1630, 1

</llo_original>
